<compile_context>
chip_gen: v5e
topology: v5e:2x2
jax: 0.10.0
libtpu: 0.0.40
codegen_flags: <defaults>
</compile_context>

<pallas_src>
import functools

import jax
import jax.numpy as jnp
from jax import lax
from jax.experimental import pallas as pl
from jax.experimental.pallas import tpu as pltpu


def _round_up(x, m):
    return ((x + m - 1) // m) * m


# --------------------------------------------------------------------------
# Fused kernel: per grid step (sequential, "arbitrary"):
#   gi_chunk = x_chunk @ W_ih^T + b_ih   (one big MXU matmul into VMEM scratch)
#   then TB GRU cell updates + running max over time.
# --------------------------------------------------------------------------
def _gru_fused_kernel(x_ref, wih_ref, bih_ref, whh_ref, bhn_ref,
                      feat_ref, gi_scr, h_scr, max_scr, *,
                      tb, bp, rp, t_real, t_pad, unroll):
    c = pl.program_id(0)
    last = pl.num_programs(0) - 1

    @pl.when(c == 0)
    def _():
        h_scr[...] = jnp.zeros_like(h_scr)          # PyTorch GRU h0 = 0
        max_scr[...] = jnp.full_like(max_scr, -jnp.inf)

    # Fused input projection for this time chunk (bf16 inputs, f32 accumulate).
    # b_hr / b_hz are pre-folded into bih; b_hn stays separate (it sits inside
    # the r-gate product in the PyTorch GRU cell).
    gi_scr[...] = (
        jnp.dot(x_ref[...], wih_ref[...], preferred_element_type=jnp.float32)
        + bih_ref[...])

    bhn = bhn_ref[...]            # (1, Rp): tiny, safe to hoist
    t0 = c * tb

    def make_step(masked):
        def step(i, carry):
            h, m = carry
            row = pl.multiple_of(i * bp, 8)
            gi = gi_scr[pl.ds(row, bp), :]                     # (Bp, 3*Rp)
            # Recurrent dots read W_hh straight from VMEM per gate band (no
            # value hoist -> no vreg spills); sigmoids overlap the n-band dot.
            gh_rz = jnp.dot(h, whh_ref[:, :2 * rp],
                            preferred_element_type=jnp.float32)
            r = jax.nn.sigmoid(gi[:, :rp] + gh_rz[:, :rp])
            z = jax.nn.sigmoid(gi[:, rp:2 * rp] + gh_rz[:, rp:])
            gh_n = jnp.dot(h, whh_ref[:, 2 * rp:],
                           preferred_element_type=jnp.float32) + bhn
            n = jnp.tanh(gi[:, 2 * rp:] + r * gh_n)
            h_new = (1.0 - z) * n + z * h
            if masked:
                valid = (t0 + i) < t_real      # padded trailing step: no-op
                h_new = jnp.where(valid, h_new, h)
                m_new = jnp.where(valid, jnp.maximum(m, h_new), m)
            else:
                m_new = jnp.maximum(m, h_new)
            return h_new, m_new
        return step

    def run(masked):
        h, m = lax.fori_loop(0, tb, make_step(masked),
                             (h_scr[...], max_scr[...]), unroll=unroll)
        h_scr[...] = h
        max_scr[...] = m

    if t_pad == t_real:
        # Static: no padded time steps anywhere -> single unmasked body.
        run(masked=False)
    else:
        # Only the final chunk contains padded steps.
        @pl.when(c != last)
        def _():
            run(masked=False)

        @pl.when(c == last)
        def _():
            run(masked=True)

    @pl.when(c == last)
    def _():
        # cls_feature = h_final[0] + h_outs.max(axis=1)[0]
        feat_ref[...] = (h_scr[...] + max_scr[...]).astype(feat_ref.dtype)


# --------------------------------------------------------------------------
# Time-block picker: largest TB (multiple of 8, <= requested) whose resident
# VMEM (double-buffered x chunk + gi scratch + weights + carries) fits budget.
# Budget 24 MiB keeps us under the 32 MiB scoped default on all generations
# (v7x has only 64 MiB physical VMEM).
# --------------------------------------------------------------------------
def _pick_time_block(requested, t, bp, h, g, rp, x_bytes, budget=24 << 20):
    fixed = (h * g * x_bytes       # W_ih resident
             + rp * g * 4          # W_hh resident
             + g * 4 + rp * 4      # biases
             + 2 * bp * rp * 4)    # h / running-max scratch
    per_tb = bp * (2 * h * x_bytes + g * 4)   # 2x-buffered x rows + gi rows
    avail = max(budget - fixed, per_tb)
    tb = min(int(requested), int(avail // per_tb), _round_up(t, 8))
    tb = max(8, (tb // 8) * 8)
    return tb


# --------------------------------------------------------------------------
# Wrapper
# --------------------------------------------------------------------------
def sentiment_forward(pad_states, params, *, time_block=128, unroll=8,
                      proj_dtype=jnp.bfloat16):
    """pad_states: (B, T, H) padded BERT token states (batch_first, float32).

    proj_dtype controls the dtype of x / W_ih for the fused projection matmul
    (f32 accumulation); the recurrence and gate math stay in f32.
    """
    B, T, H = pad_states.shape
    R = params["whh_t"].shape[0]

    # Hardware-tile padding: >=8 sublanes for batch, 128 lanes per gate band.
    Bp = max(8, _round_up(B, 8))
    Rp = _round_up(R, 128)
    G = 3 * Rp
    xb = jnp.dtype(proj_dtype).itemsize
    TB = _pick_time_block(time_block, T, Bp, H, G, Rp, xb)
    T_pad = _round_up(T, TB)
    n_chunks = T_pad // TB

    f32 = jnp.float32
    # Gate-aligned, zero-padded weights (zero padding keeps padded hidden lanes
    # at exactly 0 for all time steps).
    wih_p = jnp.zeros((H, G), f32)
    whh_p = jnp.zeros((Rp, G), f32)
    bih_p = jnp.zeros((1, G), f32)
    bhn_p = jnp.zeros((1, Rp), f32)
    for g in range(3):
        wih_p = wih_p.at[:, g * Rp:g * Rp + R].set(
            params["wih_t"][:, g * R:(g + 1) * R])
        whh_p = whh_p.at[:R, g * Rp:g * Rp + R].set(
            params["whh_t"][:, g * R:(g + 1) * R])
    # Fold b_hr / b_hz into the input bias (exact); keep b_hn separate.
    bih_p = bih_p.at[:, 0:R].set(params["bih"][:, 0:R] + params["bhh"][:, 0:R])
    bih_p = bih_p.at[:, Rp:Rp + R].set(
        params["bih"][:, R:2 * R] + params["bhh"][:, R:2 * R])
    bih_p = bih_p.at[:, 2 * Rp:2 * Rp + R].set(params["bih"][:, 2 * R:3 * R])
    bhn_p = bhn_p.at[:, :R].set(params["bhh"][:, 2 * R:3 * R])

    # Time-major; pad time to a TB multiple and batch to Bp (sublane-aligned),
    # flatten to 2D so the in-kernel gi slicing is a clean 8-aligned pl.ds.
    x = jnp.transpose(pad_states, (1, 0, 2))                    # (T, B, H)
    x = jnp.pad(x, ((0, T_pad - T), (0, Bp - B), (0, 0)))       # (T_pad, Bp, H)
    x2 = x.reshape(T_pad * Bp, H).astype(proj_dtype)

    rows = TB * Bp
    kernel = functools.partial(_gru_fused_kernel, tb=TB, bp=Bp, rp=Rp,
                               t_real=T, t_pad=T_pad, unroll=unroll)

    feat_p = pl.pallas_call(
        kernel,
        out_shape=jax.ShapeDtypeStruct((Bp, Rp), f32),
        grid_spec=pltpu.PrefetchScalarGridSpec(
            num_scalar_prefetch=0,
            grid=(n_chunks,),
            in_specs=[
                pl.BlockSpec((rows, H), lambda c: (c, 0)),   # x chunk
                pl.BlockSpec((H, G), lambda c: (0, 0)),      # W_ih^T (resident)
                pl.BlockSpec((1, G), lambda c: (0, 0)),      # b_ih (+ b_hr,b_hz)
                pl.BlockSpec((Rp, G), lambda c: (0, 0)),     # W_hh^T (resident)
                pl.BlockSpec((1, Rp), lambda c: (0, 0)),     # b_hn
            ],
            out_specs=pl.BlockSpec((Bp, Rp), lambda c: (0, 0)),   # cls_feature
            scratch_shapes=[
                pltpu.VMEM((rows, G), f32),   # gi chunk (never hits HBM)
                pltpu.VMEM((Bp, Rp), f32),    # carried hidden state h_t
                pltpu.VMEM((Bp, Rp), f32),    # running max over h_outs
            ],
        ),
        compiler_params=pltpu.CompilerParams(
            dimension_semantics=("arbitrary",),   # sequential recurrence
            vmem_limit_bytes=32 * 1024 * 1024,
        ),
    )(x2, wih_p.astype(proj_dtype), bih_p, whh_p, bhn_p)

    # Tiny classifier + un-padding in plain XLA.
    cls = feat_p[:B, :R]
    scores = cls @ params["wc_t"] + params["bc"]
    return scores, cls


# --------------------------------------------------------------------------
# Pure-JAX reference matching PyTorch GRU + classifier semantics.
# --------------------------------------------------------------------------
def reference_forward(pad_states, params):
    B, T, H = pad_states.shape
    R = params["whh_t"].shape[0]

    def step(h, x_t):
        gi = x_t @ params["wih_t"] + params["bih"]
        gh = h @ params["whh_t"] + params["bhh"]
        r = jax.nn.sigmoid(gi[:, :R] + gh[:, :R])
        z = jax.nn.sigmoid(gi[:, R:2 * R] + gh[:, R:2 * R])
        n = jnp.tanh(gi[:, 2 * R:] + r * gh[:, 2 * R:])
        h_new = (1.0 - z) * n + z * h
        return h_new, h_new

    h0 = jnp.zeros((B, R), jnp.float32)
    h_final, h_outs = lax.scan(step, h0, jnp.transpose(pad_states, (1, 0, 2)))
    cls = h_final + jnp.max(h_outs, axis=0)
    scores = cls @ params["wc_t"] + params["bc"]
    return scores, cls


def init_params(key, hidden_size, rnn_size, senti_num):
    ks = jax.random.split(key, 6)
    kg = 1.0 / jnp.sqrt(jnp.float32(rnn_size))     # PyTorch GRU init scale
    kc = 1.0 / jnp.sqrt(jnp.float32(rnn_size))     # Linear(rnn_size, senti_num)
    return {
        "wih_t": jax.random.uniform(ks[0], (hidden_size, 3 * rnn_size),
                                    jnp.float32, -kg, kg),
        "whh_t": jax.random.uniform(ks[1], (rnn_size, 3 * rnn_size),
                                    jnp.float32, -kg, kg),
        "bih": jax.random.uniform(ks[2], (1, 3 * rnn_size), jnp.float32, -kg, kg),
        "bhh": jax.random.uniform(ks[3], (1, 3 * rnn_size), jnp.float32, -kg, kg),
        "wc_t": jax.random.uniform(ks[4], (rnn_size, senti_num),
                                   jnp.float32, -kc, kc),
        "bc": jax.random.uniform(ks[5], (1, senti_num), jnp.float32, -kc, kc),
    }


if __name__ == "__main__":
    B, T, H, R, S = 2, 8, 32, 32, 4   # batch, seq, hidden_size, rnn_size, senti_num

    key = jax.random.PRNGKey(0)
    kp, kx = jax.random.split(key)
    params = init_params(kp, H, R, S)
    # Stand-in for rnn_utils.pad_sequence([bert(x)[0][0] for x in word_ids]).
    pad_states = jax.random.normal(kx, (B, T, H), jnp.float32)

    ref_scores, ref_feat = reference_forward(pad_states, params)

    # Full-f32 path: tight numerical check.
    pred_scores, cls_feature = sentiment_forward(pad_states, params,
                                                 proj_dtype=jnp.float32)
    jax.block_until_ready((pred_scores, cls_feature))
    assert pred_scores.shape == (B, S) and cls_feature.shape == (B, R)
    assert jnp.allclose(pred_scores, ref_scores, atol=2e-3, rtol=2e-3)
    assert jnp.allclose(cls_feature, ref_feat, atol=2e-3, rtol=2e-3)

    # Production setting (default): bf16 x / W_ih for the fused projection
    # matmul (f32 accumulation, f32 recurrence) -> looser tolerance.
    scores_bf, feat_bf = sentiment_forward(pad_states, params,
                                           proj_dtype=jnp.bfloat16)
    jax.block_until_ready((scores_bf, feat_bf))
    assert jnp.allclose(scores_bf, ref_scores, atol=3e-2, rtol=3e-2)
    assert jnp.allclose(feat_bf, ref_feat, atol=3e-2, rtol=3e-2)

    print("KERNEL_OK")
</pallas_src>

<mosaic_0001>
module attributes {stable_mosaic.version = 11 : i64} {
  func.func @_gru_fused_kernel(%arg0: i32, %arg1: memref<64x32xf32, #tpu.memory_space<vmem>>, %arg2: memref<32x384xf32, #tpu.memory_space<vmem>>, %arg3: memref<1x384xf32, #tpu.memory_space<vmem>>, %arg4: memref<128x384xf32, #tpu.memory_space<vmem>>, %arg5: memref<1x128xf32, #tpu.memory_space<vmem>>, %arg6: memref<8x128xf32, #tpu.memory_space<vmem>>, %arg7: memref<64x384xf32, #tpu.memory_space<vmem>>, %arg8: memref<8x128xf32, #tpu.memory_space<vmem>>, %arg9: memref<8x128xf32, #tpu.memory_space<vmem>>) attributes {dimension_semantics = [#tpu.dimension_semantics<arbitrary>], iteration_bounds = array<i64: 1>, scalar_prefetch = 0 : i64, scratch_operands = 3 : i64, tpu.core_type = #tpu.core_type<tc>, window_params = [{transform_indices = @transform_0, window_bounds = array<i64: 64, 32>}, {pipeline_mode = #tpu.pipeline_mode<synchronous>, transform_indices = @transform_1, window_bounds = array<i64: 32, 384>}, {pipeline_mode = #tpu.pipeline_mode<synchronous>, transform_indices = @transform_2, window_bounds = array<i64: 1, 384>}, {pipeline_mode = #tpu.pipeline_mode<synchronous>, transform_indices = @transform_3, window_bounds = array<i64: 128, 384>}, {pipeline_mode = #tpu.pipeline_mode<synchronous>, transform_indices = @transform_4, window_bounds = array<i64: 1, 128>}, {pipeline_mode = #tpu.pipeline_mode<synchronous>, transform_indices = @transform_5, window_bounds = array<i64: 8, 128>}]} {
    %c0_i32 = arith.constant 0 : i32
    %0 = arith.cmpi eq, %arg0, %c0_i32 : i32
    %1 = arith.extui %0 : i1 to i32
    %c0_i32_0 = arith.constant 0 : i32
    %2 = arith.cmpi ne, %1, %c0_i32_0 : i32
    scf.if %2 {
      %cst_108 = arith.constant 0.000000e+00 : f32
      %306 = vector.broadcast %cst_108 : f32 to vector<8x128xf32>
      %c0_109 = arith.constant 0 : index
      %c0_110 = arith.constant 0 : index
      %307 = vector.load %arg8[%c0_109, %c0_110] : memref<8x128xf32, #tpu.memory_space<vmem>>, vector<8x128xf32>
      tpu.vector_store %arg8[%c0_109, %c0_110], %306 {strides = array<i32>} : memref<8x128xf32, #tpu.memory_space<vmem>>, vector<8x128xf32>,
      %cst_111 = arith.constant 0xFF800000 : f32
      %308 = vector.broadcast %cst_111 : f32 to vector<8x128xf32>
      %c0_112 = arith.constant 0 : index
      %c0_113 = arith.constant 0 : index
      %309 = vector.load %arg9[%c0_112, %c0_113] : memref<8x128xf32, #tpu.memory_space<vmem>>, vector<8x128xf32>
      tpu.vector_store %arg9[%c0_112, %c0_113], %308 {strides = array<i32>} : memref<8x128xf32, #tpu.memory_space<vmem>>, vector<8x128xf32>,
    } else {
    }
    %c0 = arith.constant 0 : index
    %c0_1 = arith.constant 0 : index
    %3 = vector.load %arg1[%c0, %c0_1] : memref<64x32xf32, #tpu.memory_space<vmem>>, vector<64x32xf32>
    %c0_2 = arith.constant 0 : index
    %c0_3 = arith.constant 0 : index
    %4 = vector.load %arg2[%c0_2, %c0_3] : memref<32x384xf32, #tpu.memory_space<vmem>>, vector<32x384xf32>
    %cst = arith.constant dense<0.000000e+00> : vector<64x384xf32>
    %5 = tpu.matmul %3, %4, %cst {dimension_numbers = #tpu.dot_dimension_numbers<[1], [0], [0], [1], [0, 0, 1, 1], [], []>} : vector<64x32xf32>, vector<32x384xf32>, vector<64x384xf32> -> vector<64x384xf32>
    %c0_4 = arith.constant 0 : index
    %c0_5 = arith.constant 0 : index
    %6 = vector.load %arg3[%c0_4, %c0_5] : memref<1x384xf32, #tpu.memory_space<vmem>>, vector<1x384xf32>
    %7 = vector.broadcast %6 : vector<1x384xf32> to vector<64x384xf32>
    %8 = arith.addf %5, %7 : vector<64x384xf32>
    %c0_6 = arith.constant 0 : index
    %c0_7 = arith.constant 0 : index
    %9 = vector.load %arg7[%c0_6, %c0_7] : memref<64x384xf32, #tpu.memory_space<vmem>>, vector<64x384xf32>
    tpu.vector_store %arg7[%c0_6, %c0_7], %8 {strides = array<i32>} : memref<64x384xf32, #tpu.memory_space<vmem>>, vector<64x384xf32>,
    %c0_8 = arith.constant 0 : index
    %c0_9 = arith.constant 0 : index
    %10 = vector.load %arg5[%c0_8, %c0_9] : memref<1x128xf32, #tpu.memory_space<vmem>>, vector<1x128xf32>
    %c0_10 = arith.constant 0 : index
    %c0_11 = arith.constant 0 : index
    %11 = vector.load %arg8[%c0_10, %c0_11] : memref<8x128xf32, #tpu.memory_space<vmem>>, vector<8x128xf32>
    %c0_12 = arith.constant 0 : index
    %c0_13 = arith.constant 0 : index
    %12 = vector.load %arg9[%c0_12, %c0_13] : memref<8x128xf32, #tpu.memory_space<vmem>>, vector<8x128xf32>
    %c0_i32_14 = arith.constant 0 : i32
    %c8_i32 = arith.constant 8 : i32
    %13 = arith.muli %c0_i32_14, %c8_i32 : i32
    %14 = tpu.assume_multiple %13, 8 : i32
    %15 = arith.index_cast %14 : i32 to index
    %c0_15 = arith.constant 0 : index
    %16 = vector.load %arg7[%15, %c0_15] : memref<64x384xf32, #tpu.memory_space<vmem>>, vector<8x384xf32>
    %c0_16 = arith.constant 0 : index
    %c0_17 = arith.constant 0 : index
    %17 = vector.load %arg4[%c0_16, %c0_17] : memref<128x384xf32, #tpu.memory_space<vmem>>, vector<128x256xf32>
    %cst_18 = arith.constant dense<0.000000e+00> : vector<8x256xf32>
    %18 = tpu.matmul %11, %17, %cst_18 {dimension_numbers = #tpu.dot_dimension_numbers<[1], [0], [0], [1], [0, 0, 1, 1], [], []>} : vector<8x128xf32>, vector<128x256xf32>, vector<8x256xf32> -> vector<8x256xf32>
    %19 = vector.extract_strided_slice %16 {offsets = [0, 0], sizes = [8, 128], strides = [1, 1]} : vector<8x384xf32> to vector<8x128xf32>
    %20 = vector.extract_strided_slice %18 {offsets = [0, 0], sizes = [8, 128], strides = [1, 1]} : vector<8x256xf32> to vector<8x128xf32>
    %21 = arith.addf %19, %20 : vector<8x128xf32>
    %22 = arith.negf %21 : vector<8x128xf32>
    %23 = math.exp %22 : vector<8x128xf32>
    %cst_19 = arith.constant 1.000000e+00 : f32
    %24 = vector.broadcast %cst_19 : f32 to vector<8x128xf32>
    %25 = arith.addf %24, %23 : vector<8x128xf32>
    %26 = arith.divf %24, %25 : vector<8x128xf32>
    %27 = vector.extract_strided_slice %16 {offsets = [0, 128], sizes = [8, 128], strides = [1, 1]} : vector<8x384xf32> to vector<8x128xf32>
    %28 = vector.extract_strided_slice %18 {offsets = [0, 128], sizes = [8, 128], strides = [1, 1]} : vector<8x256xf32> to vector<8x128xf32>
    %29 = arith.addf %27, %28 : vector<8x128xf32>
    %30 = arith.negf %29 : vector<8x128xf32>
    %31 = math.exp %30 : vector<8x128xf32>
    %cst_20 = arith.constant 1.000000e+00 : f32
    %32 = vector.broadcast %cst_20 : f32 to vector<8x128xf32>
    %33 = arith.addf %32, %31 : vector<8x128xf32>
    %34 = arith.divf %32, %33 : vector<8x128xf32>
    %c0_21 = arith.constant 0 : index
    %c256 = arith.constant 256 : index
    %35 = vector.load %arg4[%c0_21, %c256] : memref<128x384xf32, #tpu.memory_space<vmem>>, vector<128x128xf32>
    %cst_22 = arith.constant dense<0.000000e+00> : vector<8x128xf32>
    %36 = tpu.matmul %11, %35, %cst_22 {dimension_numbers = #tpu.dot_dimension_numbers<[1], [0], [0], [1], [0, 0, 1, 1], [], []>} : vector<8x128xf32>, vector<128x128xf32>, vector<8x128xf32> -> vector<8x128xf32>
    %37 = vector.broadcast %10 : vector<1x128xf32> to vector<8x128xf32>
    %38 = arith.addf %36, %37 : vector<8x128xf32>
    %39 = vector.extract_strided_slice %16 {offsets = [0, 256], sizes = [8, 128], strides = [1, 1]} : vector<8x384xf32> to vector<8x128xf32>
    %40 = arith.mulf %26, %38 : vector<8x128xf32>
    %41 = arith.addf %39, %40 : vector<8x128xf32>
    %42 = math.tanh %41 : vector<8x128xf32>
    %cst_23 = arith.constant 1.000000e+00 : f32
    %43 = vector.broadcast %cst_23 : f32 to vector<8x128xf32>
    %44 = arith.subf %43, %34 : vector<8x128xf32>
    %45 = arith.mulf %44, %42 : vector<8x128xf32>
    %46 = arith.mulf %34, %11 : vector<8x128xf32>
    %47 = arith.addf %45, %46 : vector<8x128xf32>
    %48 = arith.maximumf %12, %47 : vector<8x128xf32>
    %c1_i32 = arith.constant 1 : i32
    %c8_i32_24 = arith.constant 8 : i32
    %49 = arith.muli %c1_i32, %c8_i32_24 : i32
    %50 = tpu.assume_multiple %49, 8 : i32
    %51 = arith.index_cast %50 : i32 to index
    %c0_25 = arith.constant 0 : index
    %52 = vector.load %arg7[%51, %c0_25] : memref<64x384xf32, #tpu.memory_space<vmem>>, vector<8x384xf32>
    %c0_26 = arith.constant 0 : index
    %c0_27 = arith.constant 0 : index
    %53 = vector.load %arg4[%c0_26, %c0_27] : memref<128x384xf32, #tpu.memory_space<vmem>>, vector<128x256xf32>
    %cst_28 = arith.constant dense<0.000000e+00> : vector<8x256xf32>
    %54 = tpu.matmul %47, %53, %cst_28 {dimension_numbers = #tpu.dot_dimension_numbers<[1], [0], [0], [1], [0, 0, 1, 1], [], []>} : vector<8x128xf32>, vector<128x256xf32>, vector<8x256xf32> -> vector<8x256xf32>
    %55 = vector.extract_strided_slice %52 {offsets = [0, 0], sizes = [8, 128], strides = [1, 1]} : vector<8x384xf32> to vector<8x128xf32>
    %56 = vector.extract_strided_slice %54 {offsets = [0, 0], sizes = [8, 128], strides = [1, 1]} : vector<8x256xf32> to vector<8x128xf32>
    %57 = arith.addf %55, %56 : vector<8x128xf32>
    %58 = arith.negf %57 : vector<8x128xf32>
    %59 = math.exp %58 : vector<8x128xf32>
    %cst_29 = arith.constant 1.000000e+00 : f32
    %60 = vector.broadcast %cst_29 : f32 to vector<8x128xf32>
    %61 = arith.addf %60, %59 : vector<8x128xf32>
    %62 = arith.divf %60, %61 : vector<8x128xf32>
    %63 = vector.extract_strided_slice %52 {offsets = [0, 128], sizes = [8, 128], strides = [1, 1]} : vector<8x384xf32> to vector<8x128xf32>
    %64 = vector.extract_strided_slice %54 {offsets = [0, 128], sizes = [8, 128], strides = [1, 1]} : vector<8x256xf32> to vector<8x128xf32>
    %65 = arith.addf %63, %64 : vector<8x128xf32>
    %66 = arith.negf %65 : vector<8x128xf32>
    %67 = math.exp %66 : vector<8x128xf32>
    %cst_30 = arith.constant 1.000000e+00 : f32
    %68 = vector.broadcast %cst_30 : f32 to vector<8x128xf32>
    %69 = arith.addf %68, %67 : vector<8x128xf32>
    %70 = arith.divf %68, %69 : vector<8x128xf32>
    %c0_31 = arith.constant 0 : index
    %c256_32 = arith.constant 256 : index
    %71 = vector.load %arg4[%c0_31, %c256_32] : memref<128x384xf32, #tpu.memory_space<vmem>>, vector<128x128xf32>
    %cst_33 = arith.constant dense<0.000000e+00> : vector<8x128xf32>
    %72 = tpu.matmul %47, %71, %cst_33 {dimension_numbers = #tpu.dot_dimension_numbers<[1], [0], [0], [1], [0, 0, 1, 1], [], []>} : vector<8x128xf32>, vector<128x128xf32>, vector<8x128xf32> -> vector<8x128xf32>
    %73 = vector.broadcast %10 : vector<1x128xf32> to vector<8x128xf32>
    %74 = arith.addf %72, %73 : vector<8x128xf32>
    %75 = vector.extract_strided_slice %52 {offsets = [0, 256], sizes = [8, 128], strides = [1, 1]} : vector<8x384xf32> to vector<8x128xf32>
    %76 = arith.mulf %62, %74 : vector<8x128xf32>
    %77 = arith.addf %75, %76 : vector<8x128xf32>
    %78 = math.tanh %77 : vector<8x128xf32>
    %cst_34 = arith.constant 1.000000e+00 : f32
    %79 = vector.broadcast %cst_34 : f32 to vector<8x128xf32>
    %80 = arith.subf %79, %70 : vector<8x128xf32>
    %81 = arith.mulf %80, %78 : vector<8x128xf32>
    %82 = arith.mulf %70, %47 : vector<8x128xf32>
    %83 = arith.addf %81, %82 : vector<8x128xf32>
    %84 = arith.maximumf %48, %83 : vector<8x128xf32>
    %c2_i32 = arith.constant 2 : i32
    %c8_i32_35 = arith.constant 8 : i32
    %85 = arith.muli %c2_i32, %c8_i32_35 : i32
    %86 = tpu.assume_multiple %85, 8 : i32
    %87 = arith.index_cast %86 : i32 to index
    %c0_36 = arith.constant 0 : index
    %88 = vector.load %arg7[%87, %c0_36] : memref<64x384xf32, #tpu.memory_space<vmem>>, vector<8x384xf32>
    %c0_37 = arith.constant 0 : index
    %c0_38 = arith.constant 0 : index
    %89 = vector.load %arg4[%c0_37, %c0_38] : memref<128x384xf32, #tpu.memory_space<vmem>>, vector<128x256xf32>
    %cst_39 = arith.constant dense<0.000000e+00> : vector<8x256xf32>
    %90 = tpu.matmul %83, %89, %cst_39 {dimension_numbers = #tpu.dot_dimension_numbers<[1], [0], [0], [1], [0, 0, 1, 1], [], []>} : vector<8x128xf32>, vector<128x256xf32>, vector<8x256xf32> -> vector<8x256xf32>
    %91 = vector.extract_strided_slice %88 {offsets = [0, 0], sizes = [8, 128], strides = [1, 1]} : vector<8x384xf32> to vector<8x128xf32>
    %92 = vector.extract_strided_slice %90 {offsets = [0, 0], sizes = [8, 128], strides = [1, 1]} : vector<8x256xf32> to vector<8x128xf32>
    %93 = arith.addf %91, %92 : vector<8x128xf32>
    %94 = arith.negf %93 : vector<8x128xf32>
    %95 = math.exp %94 : vector<8x128xf32>
    %cst_40 = arith.constant 1.000000e+00 : f32
    %96 = vector.broadcast %cst_40 : f32 to vector<8x128xf32>
    %97 = arith.addf %96, %95 : vector<8x128xf32>
    %98 = arith.divf %96, %97 : vector<8x128xf32>
    %99 = vector.extract_strided_slice %88 {offsets = [0, 128], sizes = [8, 128], strides = [1, 1]} : vector<8x384xf32> to vector<8x128xf32>
    %100 = vector.extract_strided_slice %90 {offsets = [0, 128], sizes = [8, 128], strides = [1, 1]} : vector<8x256xf32> to vector<8x128xf32>
    %101 = arith.addf %99, %100 : vector<8x128xf32>
    %102 = arith.negf %101 : vector<8x128xf32>
    %103 = math.exp %102 : vector<8x128xf32>
    %cst_41 = arith.constant 1.000000e+00 : f32
    %104 = vector.broadcast %cst_41 : f32 to vector<8x128xf32>
    %105 = arith.addf %104, %103 : vector<8x128xf32>
    %106 = arith.divf %104, %105 : vector<8x128xf32>
    %c0_42 = arith.constant 0 : index
    %c256_43 = arith.constant 256 : index
    %107 = vector.load %arg4[%c0_42, %c256_43] : memref<128x384xf32, #tpu.memory_space<vmem>>, vector<128x128xf32>
    %cst_44 = arith.constant dense<0.000000e+00> : vector<8x128xf32>
    %108 = tpu.matmul %83, %107, %cst_44 {dimension_numbers = #tpu.dot_dimension_numbers<[1], [0], [0], [1], [0, 0, 1, 1], [], []>} : vector<8x128xf32>, vector<128x128xf32>, vector<8x128xf32> -> vector<8x128xf32>
    %109 = vector.broadcast %10 : vector<1x128xf32> to vector<8x128xf32>
    %110 = arith.addf %108, %109 : vector<8x128xf32>
    %111 = vector.extract_strided_slice %88 {offsets = [0, 256], sizes = [8, 128], strides = [1, 1]} : vector<8x384xf32> to vector<8x128xf32>
    %112 = arith.mulf %98, %110 : vector<8x128xf32>
    %113 = arith.addf %111, %112 : vector<8x128xf32>
    %114 = math.tanh %113 : vector<8x128xf32>
    %cst_45 = arith.constant 1.000000e+00 : f32
    %115 = vector.broadcast %cst_45 : f32 to vector<8x128xf32>
    %116 = arith.subf %115, %106 : vector<8x128xf32>
    %117 = arith.mulf %116, %114 : vector<8x128xf32>
    %118 = arith.mulf %106, %83 : vector<8x128xf32>
    %119 = arith.addf %117, %118 : vector<8x128xf32>
    %120 = arith.maximumf %84, %119 : vector<8x128xf32>
    %c3_i32 = arith.constant 3 : i32
    %c8_i32_46 = arith.constant 8 : i32
    %121 = arith.muli %c3_i32, %c8_i32_46 : i32
    %122 = tpu.assume_multiple %121, 8 : i32
    %123 = arith.index_cast %122 : i32 to index
    %c0_47 = arith.constant 0 : index
    %124 = vector.load %arg7[%123, %c0_47] : memref<64x384xf32, #tpu.memory_space<vmem>>, vector<8x384xf32>
    %c0_48 = arith.constant 0 : index
    %c0_49 = arith.constant 0 : index
    %125 = vector.load %arg4[%c0_48, %c0_49] : memref<128x384xf32, #tpu.memory_space<vmem>>, vector<128x256xf32>
    %cst_50 = arith.constant dense<0.000000e+00> : vector<8x256xf32>
    %126 = tpu.matmul %119, %125, %cst_50 {dimension_numbers = #tpu.dot_dimension_numbers<[1], [0], [0], [1], [0, 0, 1, 1], [], []>} : vector<8x128xf32>, vector<128x256xf32>, vector<8x256xf32> -> vector<8x256xf32>
    %127 = vector.extract_strided_slice %124 {offsets = [0, 0], sizes = [8, 128], strides = [1, 1]} : vector<8x384xf32> to vector<8x128xf32>
    %128 = vector.extract_strided_slice %126 {offsets = [0, 0], sizes = [8, 128], strides = [1, 1]} : vector<8x256xf32> to vector<8x128xf32>
    %129 = arith.addf %127, %128 : vector<8x128xf32>
    %130 = arith.negf %129 : vector<8x128xf32>
    %131 = math.exp %130 : vector<8x128xf32>
    %cst_51 = arith.constant 1.000000e+00 : f32
    %132 = vector.broadcast %cst_51 : f32 to vector<8x128xf32>
    %133 = arith.addf %132, %131 : vector<8x128xf32>
    %134 = arith.divf %132, %133 : vector<8x128xf32>
    %135 = vector.extract_strided_slice %124 {offsets = [0, 128], sizes = [8, 128], strides = [1, 1]} : vector<8x384xf32> to vector<8x128xf32>
    %136 = vector.extract_strided_slice %126 {offsets = [0, 128], sizes = [8, 128], strides = [1, 1]} : vector<8x256xf32> to vector<8x128xf32>
    %137 = arith.addf %135, %136 : vector<8x128xf32>
    %138 = arith.negf %137 : vector<8x128xf32>
    %139 = math.exp %138 : vector<8x128xf32>
    %cst_52 = arith.constant 1.000000e+00 : f32
    %140 = vector.broadcast %cst_52 : f32 to vector<8x128xf32>
    %141 = arith.addf %140, %139 : vector<8x128xf32>
    %142 = arith.divf %140, %141 : vector<8x128xf32>
    %c0_53 = arith.constant 0 : index
    %c256_54 = arith.constant 256 : index
    %143 = vector.load %arg4[%c0_53, %c256_54] : memref<128x384xf32, #tpu.memory_space<vmem>>, vector<128x128xf32>
    %cst_55 = arith.constant dense<0.000000e+00> : vector<8x128xf32>
    %144 = tpu.matmul %119, %143, %cst_55 {dimension_numbers = #tpu.dot_dimension_numbers<[1], [0], [0], [1], [0, 0, 1, 1], [], []>} : vector<8x128xf32>, vector<128x128xf32>, vector<8x128xf32> -> vector<8x128xf32>
    %145 = vector.broadcast %10 : vector<1x128xf32> to vector<8x128xf32>
    %146 = arith.addf %144, %145 : vector<8x128xf32>
    %147 = vector.extract_strided_slice %124 {offsets = [0, 256], sizes = [8, 128], strides = [1, 1]} : vector<8x384xf32> to vector<8x128xf32>
    %148 = arith.mulf %134, %146 : vector<8x128xf32>
    %149 = arith.addf %147, %148 : vector<8x128xf32>
    %150 = math.tanh %149 : vector<8x128xf32>
    %cst_56 = arith.constant 1.000000e+00 : f32
    %151 = vector.broadcast %cst_56 : f32 to vector<8x128xf32>
    %152 = arith.subf %151, %142 : vector<8x128xf32>
    %153 = arith.mulf %152, %150 : vector<8x128xf32>
    %154 = arith.mulf %142, %119 : vector<8x128xf32>
    %155 = arith.addf %153, %154 : vector<8x128xf32>
    %156 = arith.maximumf %120, %155 : vector<8x128xf32>
    %c4_i32 = arith.constant 4 : i32
    %c8_i32_57 = arith.constant 8 : i32
    %157 = arith.muli %c4_i32, %c8_i32_57 : i32
    %158 = tpu.assume_multiple %157, 8 : i32
    %159 = arith.index_cast %158 : i32 to index
    %c0_58 = arith.constant 0 : index
    %160 = vector.load %arg7[%159, %c0_58] : memref<64x384xf32, #tpu.memory_space<vmem>>, vector<8x384xf32>
    %c0_59 = arith.constant 0 : index
    %c0_60 = arith.constant 0 : index
    %161 = vector.load %arg4[%c0_59, %c0_60] : memref<128x384xf32, #tpu.memory_space<vmem>>, vector<128x256xf32>
    %cst_61 = arith.constant dense<0.000000e+00> : vector<8x256xf32>
    %162 = tpu.matmul %155, %161, %cst_61 {dimension_numbers = #tpu.dot_dimension_numbers<[1], [0], [0], [1], [0, 0, 1, 1], [], []>} : vector<8x128xf32>, vector<128x256xf32>, vector<8x256xf32> -> vector<8x256xf32>
    %163 = vector.extract_strided_slice %160 {offsets = [0, 0], sizes = [8, 128], strides = [1, 1]} : vector<8x384xf32> to vector<8x128xf32>
    %164 = vector.extract_strided_slice %162 {offsets = [0, 0], sizes = [8, 128], strides = [1, 1]} : vector<8x256xf32> to vector<8x128xf32>
    %165 = arith.addf %163, %164 : vector<8x128xf32>
    %166 = arith.negf %165 : vector<8x128xf32>
    %167 = math.exp %166 : vector<8x128xf32>
    %cst_62 = arith.constant 1.000000e+00 : f32
    %168 = vector.broadcast %cst_62 : f32 to vector<8x128xf32>
    %169 = arith.addf %168, %167 : vector<8x128xf32>
    %170 = arith.divf %168, %169 : vector<8x128xf32>
    %171 = vector.extract_strided_slice %160 {offsets = [0, 128], sizes = [8, 128], strides = [1, 1]} : vector<8x384xf32> to vector<8x128xf32>
    %172 = vector.extract_strided_slice %162 {offsets = [0, 128], sizes = [8, 128], strides = [1, 1]} : vector<8x256xf32> to vector<8x128xf32>
    %173 = arith.addf %171, %172 : vector<8x128xf32>
    %174 = arith.negf %173 : vector<8x128xf32>
    %175 = math.exp %174 : vector<8x128xf32>
    %cst_63 = arith.constant 1.000000e+00 : f32
    %176 = vector.broadcast %cst_63 : f32 to vector<8x128xf32>
    %177 = arith.addf %176, %175 : vector<8x128xf32>
    %178 = arith.divf %176, %177 : vector<8x128xf32>
    %c0_64 = arith.constant 0 : index
    %c256_65 = arith.constant 256 : index
    %179 = vector.load %arg4[%c0_64, %c256_65] : memref<128x384xf32, #tpu.memory_space<vmem>>, vector<128x128xf32>
    %cst_66 = arith.constant dense<0.000000e+00> : vector<8x128xf32>
    %180 = tpu.matmul %155, %179, %cst_66 {dimension_numbers = #tpu.dot_dimension_numbers<[1], [0], [0], [1], [0, 0, 1, 1], [], []>} : vector<8x128xf32>, vector<128x128xf32>, vector<8x128xf32> -> vector<8x128xf32>
    %181 = vector.broadcast %10 : vector<1x128xf32> to vector<8x128xf32>
    %182 = arith.addf %180, %181 : vector<8x128xf32>
    %183 = vector.extract_strided_slice %160 {offsets = [0, 256], sizes = [8, 128], strides = [1, 1]} : vector<8x384xf32> to vector<8x128xf32>
    %184 = arith.mulf %170, %182 : vector<8x128xf32>
    %185 = arith.addf %183, %184 : vector<8x128xf32>
    %186 = math.tanh %185 : vector<8x128xf32>
    %cst_67 = arith.constant 1.000000e+00 : f32
    %187 = vector.broadcast %cst_67 : f32 to vector<8x128xf32>
    %188 = arith.subf %187, %178 : vector<8x128xf32>
    %189 = arith.mulf %188, %186 : vector<8x128xf32>
    %190 = arith.mulf %178, %155 : vector<8x128xf32>
    %191 = arith.addf %189, %190 : vector<8x128xf32>
    %192 = arith.maximumf %156, %191 : vector<8x128xf32>
    %c5_i32 = arith.constant 5 : i32
    %c8_i32_68 = arith.constant 8 : i32
    %193 = arith.muli %c5_i32, %c8_i32_68 : i32
    %194 = tpu.assume_multiple %193, 8 : i32
    %195 = arith.index_cast %194 : i32 to index
    %c0_69 = arith.constant 0 : index
    %196 = vector.load %arg7[%195, %c0_69] : memref<64x384xf32, #tpu.memory_space<vmem>>, vector<8x384xf32>
    %c0_70 = arith.constant 0 : index
    %c0_71 = arith.constant 0 : index
    %197 = vector.load %arg4[%c0_70, %c0_71] : memref<128x384xf32, #tpu.memory_space<vmem>>, vector<128x256xf32>
    %cst_72 = arith.constant dense<0.000000e+00> : vector<8x256xf32>
    %198 = tpu.matmul %191, %197, %cst_72 {dimension_numbers = #tpu.dot_dimension_numbers<[1], [0], [0], [1], [0, 0, 1, 1], [], []>} : vector<8x128xf32>, vector<128x256xf32>, vector<8x256xf32> -> vector<8x256xf32>
    %199 = vector.extract_strided_slice %196 {offsets = [0, 0], sizes = [8, 128], strides = [1, 1]} : vector<8x384xf32> to vector<8x128xf32>
    %200 = vector.extract_strided_slice %198 {offsets = [0, 0], sizes = [8, 128], strides = [1, 1]} : vector<8x256xf32> to vector<8x128xf32>
    %201 = arith.addf %199, %200 : vector<8x128xf32>
    %202 = arith.negf %201 : vector<8x128xf32>
    %203 = math.exp %202 : vector<8x128xf32>
    %cst_73 = arith.constant 1.000000e+00 : f32
    %204 = vector.broadcast %cst_73 : f32 to vector<8x128xf32>
    %205 = arith.addf %204, %203 : vector<8x128xf32>
    %206 = arith.divf %204, %205 : vector<8x128xf32>
    %207 = vector.extract_strided_slice %196 {offsets = [0, 128], sizes = [8, 128], strides = [1, 1]} : vector<8x384xf32> to vector<8x128xf32>
    %208 = vector.extract_strided_slice %198 {offsets = [0, 128], sizes = [8, 128], strides = [1, 1]} : vector<8x256xf32> to vector<8x128xf32>
    %209 = arith.addf %207, %208 : vector<8x128xf32>
    %210 = arith.negf %209 : vector<8x128xf32>
    %211 = math.exp %210 : vector<8x128xf32>
    %cst_74 = arith.constant 1.000000e+00 : f32
    %212 = vector.broadcast %cst_74 : f32 to vector<8x128xf32>
    %213 = arith.addf %212, %211 : vector<8x128xf32>
    %214 = arith.divf %212, %213 : vector<8x128xf32>
    %c0_75 = arith.constant 0 : index
    %c256_76 = arith.constant 256 : index
    %215 = vector.load %arg4[%c0_75, %c256_76] : memref<128x384xf32, #tpu.memory_space<vmem>>, vector<128x128xf32>
    %cst_77 = arith.constant dense<0.000000e+00> : vector<8x128xf32>
    %216 = tpu.matmul %191, %215, %cst_77 {dimension_numbers = #tpu.dot_dimension_numbers<[1], [0], [0], [1], [0, 0, 1, 1], [], []>} : vector<8x128xf32>, vector<128x128xf32>, vector<8x128xf32> -> vector<8x128xf32>
    %217 = vector.broadcast %10 : vector<1x128xf32> to vector<8x128xf32>
    %218 = arith.addf %216, %217 : vector<8x128xf32>
    %219 = vector.extract_strided_slice %196 {offsets = [0, 256], sizes = [8, 128], strides = [1, 1]} : vector<8x384xf32> to vector<8x128xf32>
    %220 = arith.mulf %206, %218 : vector<8x128xf32>
    %221 = arith.addf %219, %220 : vector<8x128xf32>
    %222 = math.tanh %221 : vector<8x128xf32>
    %cst_78 = arith.constant 1.000000e+00 : f32
    %223 = vector.broadcast %cst_78 : f32 to vector<8x128xf32>
    %224 = arith.subf %223, %214 : vector<8x128xf32>
    %225 = arith.mulf %224, %222 : vector<8x128xf32>
    %226 = arith.mulf %214, %191 : vector<8x128xf32>
    %227 = arith.addf %225, %226 : vector<8x128xf32>
    %228 = arith.maximumf %192, %227 : vector<8x128xf32>
    %c6_i32 = arith.constant 6 : i32
    %c8_i32_79 = arith.constant 8 : i32
    %229 = arith.muli %c6_i32, %c8_i32_79 : i32
    %230 = tpu.assume_multiple %229, 8 : i32
    %231 = arith.index_cast %230 : i32 to index
    %c0_80 = arith.constant 0 : index
    %232 = vector.load %arg7[%231, %c0_80] : memref<64x384xf32, #tpu.memory_space<vmem>>, vector<8x384xf32>
    %c0_81 = arith.constant 0 : index
    %c0_82 = arith.constant 0 : index
    %233 = vector.load %arg4[%c0_81, %c0_82] : memref<128x384xf32, #tpu.memory_space<vmem>>, vector<128x256xf32>
    %cst_83 = arith.constant dense<0.000000e+00> : vector<8x256xf32>
    %234 = tpu.matmul %227, %233, %cst_83 {dimension_numbers = #tpu.dot_dimension_numbers<[1], [0], [0], [1], [0, 0, 1, 1], [], []>} : vector<8x128xf32>, vector<128x256xf32>, vector<8x256xf32> -> vector<8x256xf32>
    %235 = vector.extract_strided_slice %232 {offsets = [0, 0], sizes = [8, 128], strides = [1, 1]} : vector<8x384xf32> to vector<8x128xf32>
    %236 = vector.extract_strided_slice %234 {offsets = [0, 0], sizes = [8, 128], strides = [1, 1]} : vector<8x256xf32> to vector<8x128xf32>
    %237 = arith.addf %235, %236 : vector<8x128xf32>
    %238 = arith.negf %237 : vector<8x128xf32>
    %239 = math.exp %238 : vector<8x128xf32>
    %cst_84 = arith.constant 1.000000e+00 : f32
    %240 = vector.broadcast %cst_84 : f32 to vector<8x128xf32>
    %241 = arith.addf %240, %239 : vector<8x128xf32>
    %242 = arith.divf %240, %241 : vector<8x128xf32>
    %243 = vector.extract_strided_slice %232 {offsets = [0, 128], sizes = [8, 128], strides = [1, 1]} : vector<8x384xf32> to vector<8x128xf32>
    %244 = vector.extract_strided_slice %234 {offsets = [0, 128], sizes = [8, 128], strides = [1, 1]} : vector<8x256xf32> to vector<8x128xf32>
    %245 = arith.addf %243, %244 : vector<8x128xf32>
    %246 = arith.negf %245 : vector<8x128xf32>
    %247 = math.exp %246 : vector<8x128xf32>
    %cst_85 = arith.constant 1.000000e+00 : f32
    %248 = vector.broadcast %cst_85 : f32 to vector<8x128xf32>
    %249 = arith.addf %248, %247 : vector<8x128xf32>
    %250 = arith.divf %248, %249 : vector<8x128xf32>
    %c0_86 = arith.constant 0 : index
    %c256_87 = arith.constant 256 : index
    %251 = vector.load %arg4[%c0_86, %c256_87] : memref<128x384xf32, #tpu.memory_space<vmem>>, vector<128x128xf32>
    %cst_88 = arith.constant dense<0.000000e+00> : vector<8x128xf32>
    %252 = tpu.matmul %227, %251, %cst_88 {dimension_numbers = #tpu.dot_dimension_numbers<[1], [0], [0], [1], [0, 0, 1, 1], [], []>} : vector<8x128xf32>, vector<128x128xf32>, vector<8x128xf32> -> vector<8x128xf32>
    %253 = vector.broadcast %10 : vector<1x128xf32> to vector<8x128xf32>
    %254 = arith.addf %252, %253 : vector<8x128xf32>
    %255 = vector.extract_strided_slice %232 {offsets = [0, 256], sizes = [8, 128], strides = [1, 1]} : vector<8x384xf32> to vector<8x128xf32>
    %256 = arith.mulf %242, %254 : vector<8x128xf32>
    %257 = arith.addf %255, %256 : vector<8x128xf32>
    %258 = math.tanh %257 : vector<8x128xf32>
    %cst_89 = arith.constant 1.000000e+00 : f32
    %259 = vector.broadcast %cst_89 : f32 to vector<8x128xf32>
    %260 = arith.subf %259, %250 : vector<8x128xf32>
    %261 = arith.mulf %260, %258 : vector<8x128xf32>
    %262 = arith.mulf %250, %227 : vector<8x128xf32>
    %263 = arith.addf %261, %262 : vector<8x128xf32>
    %264 = arith.maximumf %228, %263 : vector<8x128xf32>
    %c7_i32 = arith.constant 7 : i32
    %c8_i32_90 = arith.constant 8 : i32
    %265 = arith.muli %c7_i32, %c8_i32_90 : i32
    %266 = tpu.assume_multiple %265, 8 : i32
    %267 = arith.index_cast %266 : i32 to index
    %c0_91 = arith.constant 0 : index
    %268 = vector.load %arg7[%267, %c0_91] : memref<64x384xf32, #tpu.memory_space<vmem>>, vector<8x384xf32>
    %c0_92 = arith.constant 0 : index
    %c0_93 = arith.constant 0 : index
    %269 = vector.load %arg4[%c0_92, %c0_93] : memref<128x384xf32, #tpu.memory_space<vmem>>, vector<128x256xf32>
    %cst_94 = arith.constant dense<0.000000e+00> : vector<8x256xf32>
    %270 = tpu.matmul %263, %269, %cst_94 {dimension_numbers = #tpu.dot_dimension_numbers<[1], [0], [0], [1], [0, 0, 1, 1], [], []>} : vector<8x128xf32>, vector<128x256xf32>, vector<8x256xf32> -> vector<8x256xf32>
    %271 = vector.extract_strided_slice %268 {offsets = [0, 0], sizes = [8, 128], strides = [1, 1]} : vector<8x384xf32> to vector<8x128xf32>
    %272 = vector.extract_strided_slice %270 {offsets = [0, 0], sizes = [8, 128], strides = [1, 1]} : vector<8x256xf32> to vector<8x128xf32>
    %273 = arith.addf %271, %272 : vector<8x128xf32>
    %274 = arith.negf %273 : vector<8x128xf32>
    %275 = math.exp %274 : vector<8x128xf32>
    %cst_95 = arith.constant 1.000000e+00 : f32
    %276 = vector.broadcast %cst_95 : f32 to vector<8x128xf32>
    %277 = arith.addf %276, %275 : vector<8x128xf32>
    %278 = arith.divf %276, %277 : vector<8x128xf32>
    %279 = vector.extract_strided_slice %268 {offsets = [0, 128], sizes = [8, 128], strides = [1, 1]} : vector<8x384xf32> to vector<8x128xf32>
    %280 = vector.extract_strided_slice %270 {offsets = [0, 128], sizes = [8, 128], strides = [1, 1]} : vector<8x256xf32> to vector<8x128xf32>
    %281 = arith.addf %279, %280 : vector<8x128xf32>
    %282 = arith.negf %281 : vector<8x128xf32>
    %283 = math.exp %282 : vector<8x128xf32>
    %cst_96 = arith.constant 1.000000e+00 : f32
    %284 = vector.broadcast %cst_96 : f32 to vector<8x128xf32>
    %285 = arith.addf %284, %283 : vector<8x128xf32>
    %286 = arith.divf %284, %285 : vector<8x128xf32>
    %c0_97 = arith.constant 0 : index
    %c256_98 = arith.constant 256 : index
    %287 = vector.load %arg4[%c0_97, %c256_98] : memref<128x384xf32, #tpu.memory_space<vmem>>, vector<128x128xf32>
    %cst_99 = arith.constant dense<0.000000e+00> : vector<8x128xf32>
    %288 = tpu.matmul %263, %287, %cst_99 {dimension_numbers = #tpu.dot_dimension_numbers<[1], [0], [0], [1], [0, 0, 1, 1], [], []>} : vector<8x128xf32>, vector<128x128xf32>, vector<8x128xf32> -> vector<8x128xf32>
    %289 = vector.broadcast %10 : vector<1x128xf32> to vector<8x128xf32>
    %290 = arith.addf %288, %289 : vector<8x128xf32>
    %291 = vector.extract_strided_slice %268 {offsets = [0, 256], sizes = [8, 128], strides = [1, 1]} : vector<8x384xf32> to vector<8x128xf32>
    %292 = arith.mulf %278, %290 : vector<8x128xf32>
    %293 = arith.addf %291, %292 : vector<8x128xf32>
    %294 = math.tanh %293 : vector<8x128xf32>
    %cst_100 = arith.constant 1.000000e+00 : f32
    %295 = vector.broadcast %cst_100 : f32 to vector<8x128xf32>
    %296 = arith.subf %295, %286 : vector<8x128xf32>
    %297 = arith.mulf %296, %294 : vector<8x128xf32>
    %298 = arith.mulf %286, %263 : vector<8x128xf32>
    %299 = arith.addf %297, %298 : vector<8x128xf32>
    %300 = arith.maximumf %264, %299 : vector<8x128xf32>
    %c8_i32_101 = arith.constant 8 : i32
    %c0_102 = arith.constant 0 : index
    %c0_103 = arith.constant 0 : index
    %301 = vector.load %arg8[%c0_102, %c0_103] : memref<8x128xf32, #tpu.memory_space<vmem>>, vector<8x128xf32>
    tpu.vector_store %arg8[%c0_102, %c0_103], %299 {strides = array<i32>} : memref<8x128xf32, #tpu.memory_space<vmem>>, vector<8x128xf32>,
    %c0_104 = arith.constant 0 : index
    %c0_105 = arith.constant 0 : index
    %302 = vector.load %arg9[%c0_104, %c0_105] : memref<8x128xf32, #tpu.memory_space<vmem>>, vector<8x128xf32>
    tpu.vector_store %arg9[%c0_104, %c0_105], %300 {strides = array<i32>} : memref<8x128xf32, #tpu.memory_space<vmem>>, vector<8x128xf32>,
    %c0_i32_106 = arith.constant 0 : i32
    %303 = arith.cmpi eq, %arg0, %c0_i32_106 : i32
    %304 = arith.extui %303 : i1 to i32
    %c0_i32_107 = arith.constant 0 : i32
    %305 = arith.cmpi ne, %304, %c0_i32_107 : i32
    scf.if %305 {
      %c0_108 = arith.constant 0 : index
      %c0_109 = arith.constant 0 : index
      %306 = vector.load %arg8[%c0_108, %c0_109] : memref<8x128xf32, #tpu.memory_space<vmem>>, vector<8x128xf32>
      %c0_110 = arith.constant 0 : index
      %c0_111 = arith.constant 0 : index
      %307 = vector.load %arg9[%c0_110, %c0_111] : memref<8x128xf32, #tpu.memory_space<vmem>>, vector<8x128xf32>
      %308 = arith.addf %306, %307 : vector<8x128xf32>
      %c0_112 = arith.constant 0 : index
      %c0_113 = arith.constant 0 : index
      %309 = vector.load %arg6[%c0_112, %c0_113] : memref<8x128xf32, #tpu.memory_space<vmem>>, vector<8x128xf32>
      tpu.vector_store %arg6[%c0_112, %c0_113], %308 {strides = array<i32>} : memref<8x128xf32, #tpu.memory_space<vmem>>, vector<8x128xf32>,
    } else {
    }
    return
  }
  func.func @transform_0(%arg0: i32) -> (i32, i32) {
    %c0_i32 = arith.constant 0 : i32
    %c0_i32_0 = arith.constant 0 : i32
    return %arg0, %c0_i32 : i32, i32
  }
  func.func @transform_1(%arg0: i32) -> (i32, i32) {
    %c0_i32 = arith.constant 0 : i32
    %c0_i32_0 = arith.constant 0 : i32
    %c0_i32_1 = arith.constant 0 : i32
    return %c0_i32, %c0_i32_0 : i32, i32
  }
  func.func @transform_2(%arg0: i32) -> (i32, i32) {
    %c0_i32 = arith.constant 0 : i32
    %c0_i32_0 = arith.constant 0 : i32
    %c0_i32_1 = arith.constant 0 : i32
    return %c0_i32, %c0_i32_0 : i32, i32
  }
  func.func @transform_3(%arg0: i32) -> (i32, i32) {
    %c0_i32 = arith.constant 0 : i32
    %c0_i32_0 = arith.constant 0 : i32
    %c0_i32_1 = arith.constant 0 : i32
    return %c0_i32, %c0_i32_0 : i32, i32
  }
  func.func @transform_4(%arg0: i32) -> (i32, i32) {
    %c0_i32 = arith.constant 0 : i32
    %c0_i32_0 = arith.constant 0 : i32
    %c0_i32_1 = arith.constant 0 : i32
    return %c0_i32, %c0_i32_0 : i32, i32
  }
  func.func @transform_5(%arg0: i32) -> (i32, i32) {
    %c0_i32 = arith.constant 0 : i32
    %c0_i32_0 = arith.constant 0 : i32
    %c0_i32_1 = arith.constant 0 : i32
    return %c0_i32, %c0_i32_0 : i32, i32
  }
}

</mosaic_0001>

<llo_original>
// kernel: tpu_custom_call.1
$region0: #{tpu_custom_call.1}
  #allocation0 [shape = 'u32[]', space=smem, size = 0x4, offset = 0x4, fixed_abs, tag = 'smem constant byte address 0x4 - core index']
  #allocation1 [shape = 'u32[72,128]{1,0:T(1,128)}', space=vmem, size = 0x9000, scoped, tag = 'internal scratch']
  #allocation2 [shape = 'f32[64,384]{1,0:T(8,128)}', space=vmem, size = 0x18000, scoped, tag = 'scratch operand']
  #allocation3 [shape = 'f32[8,128]{1,0:T(8,128)}', space=vmem, size = 0x1000, scoped, tag = 'scratch operand']
  #allocation4 [shape = 'f32[8,128]{1,0:T(8,128)}', space=vmem, size = 0x1000, scoped, tag = 'scratch operand']
  %s0 = inlined_call_operand.vmem [shape: f32[64,32], index: 0, kind: input, shape index: {}]
  %s1 = inlined_call_operand.vmem [shape: f32[32,384], index: 1, kind: input, shape index: {}]
  %s2 = inlined_call_operand.hbm [shape: f32[1,384], index: 2, kind: input, shape index: {}]
  %s3 = inlined_call_operand.hbm [shape: f32[128,384], index: 3, kind: input, shape index: {}]
  %s4 = inlined_call_operand.vmem [shape: f32[1,128], index: 4, kind: input, shape index: {}]
  %s5 = inlined_call_operand.hbm [shape: f32[8,128], index: 5, kind: output, shape index: {}]
  %s6 = sld [smem:[#allocation0]]
  $region46: #{tpu_custom_call.1} parent=0
    _
  %s8 = ssub.s32 1, %s6
  %s9 = scalar_select 0, %s8, %s6
  $region1: #{tpu_custom_call.1} parent=0
    #allocation5 [shape = 'u8[1536]{0}', space=vmem, size = 0x800, scoped, tag = 'input window, operand 2, single buffered']
    #allocation6 [shape = 's32[1]{0}', space=sflag, size = 0x4, scoped, tag = 'scoped memory for tpu_custom_call.1']
    #allocation7 [shape = 's32[1]{0}', space=sflag, size = 0x4, scoped, tag = 'scoped memory for tpu_custom_call.1']
    #allocation8 [shape = 'u8[196608]{0}', space=vmem, size = 0x30000, scoped, tag = 'input window, operand 3, single buffered']
    #allocation9 [shape = 's32[1]{0}', space=sflag, size = 0x4, scoped, tag = 'scoped memory for tpu_custom_call.1']
    #allocation10 [shape = 'u8[4096]{0}', space=vmem, size = 0x1000, scoped, tag = 'output window, operand 0, single buffered']
    %10 = vsyncpa [#allocation6], 0
    %11 = vsyncpa [#allocation9], 0
    %12 = vsyncpa [#allocation7], 0
    // Predicated region
    $region2: #{tpu_custom_call.1} parent=1 // pred_check
      _
    $region3: #{tpu_custom_call.1} parent=1 // pred_check_branch
      %14 = sbr.rel (0) target = $region5
    $region4: #{tpu_custom_call.1} parent=1 // pred_region
      _
    $region5: #{tpu_custom_call.1} parent=1 // pred_fallthru
      _
    // Predicated region
    $region6: #{tpu_custom_call.1} parent=1 // pred_check
      _
    $region7: #{tpu_custom_call.1} parent=1 // pred_check_branch
      %16 = sbr.rel (0) target = $region9
    $region8: #{tpu_custom_call.1} parent=1 // pred_region
      _
    $region9: #{tpu_custom_call.1} parent=1 // pred_fallthru
      _
    // Predicated region
    $region10: #{tpu_custom_call.1} parent=1 // pred_check
      _
    $region11: #{tpu_custom_call.1} parent=1 // pred_check_branch
      %18 = sbr.rel (0) target = $region13
    $region12: #{tpu_custom_call.1} parent=1 // pred_region
      %20 = vsyncadd [#allocation6], 0
      %s22 = sshll.u32 %s2, 4
      %s23 = int_to_ptr.hbm [resolvable:$true] %s22
      %s24 = sshll.u32 [#allocation5], 4
      %s25 = int_to_ptr.vmem [resolvable:$true] %s24
      %27 = dma.hbm_to_vmem [thread:$0]  %s23, 48, %s25, [#allocation6]
    $region13: #{tpu_custom_call.1} parent=1 // pred_fallthru
      _
    // Predicated region
    $region14: #{tpu_custom_call.1} parent=1 // pred_check
      _
    $region15: #{tpu_custom_call.1} parent=1 // pred_check_branch
      %29 = sbr.rel (0) target = $region17
    $region16: #{tpu_custom_call.1} parent=1 // pred_region
      %31 = vsyncadd [#allocation9], 0
      %s32 = sshll.u32 %s3, 4
      %s33 = int_to_ptr.hbm [resolvable:$true] %s32
      %s34 = sshll.u32 [#allocation8], 4
      %s35 = int_to_ptr.vmem [resolvable:$true] %s34
      %40 = dma.hbm_to_vmem [thread:$0]  %s33, 6144, %s35, [#allocation9], 384, 384, 24
    $region17: #{tpu_custom_call.1} parent=1 // pred_fallthru
      _
    // Predicated region
    $region18: #{tpu_custom_call.1} parent=1 // pred_check
      _
    $region19: #{tpu_custom_call.1} parent=1 // pred_check_branch
      %42 = sbr.rel (0) target = $region21
    $region20: #{tpu_custom_call.1} parent=1 // pred_region
      _
    $region21: #{tpu_custom_call.1} parent=1 // pred_fallthru
      _
    // Predicated region
    $region22: #{tpu_custom_call.1} parent=1 // pred_check
      _
    $region23: #{tpu_custom_call.1} parent=1 // pred_check_branch
      %44 = sbr.rel (0) target = $region25
    $region24: #{tpu_custom_call.1} parent=1 // pred_region
      %46 = dma.done [#allocation6], 48
    $region25: #{tpu_custom_call.1} parent=1 // pred_fallthru
      _
    // Predicated region
    $region26: #{tpu_custom_call.1} parent=1 // pred_check
      _
    $region27: #{tpu_custom_call.1} parent=1 // pred_check_branch
      %48 = sbr.rel (0) target = $region29
    $region28: #{tpu_custom_call.1} parent=1 // pred_region
      %50 = dma.done [#allocation9], 6144
    $region29: #{tpu_custom_call.1} parent=1 // pred_fallthru
      _
    %p51 = scmp.eq.s32.totalorder 0, 0
    // Predicated region
    $region30: #{tpu_custom_call.1} parent=1 // pred_check
      %p52 = pneg %p51
    $region31: #{tpu_custom_call.1} parent=1 // pred_check_branch
      %54 = sbr.rel (%p52) target = $region33
    $region32: #{tpu_custom_call.1} parent=1 // pred_region
      %55 = vst [vmem:[#allocation3] sm:$0xff] 0.0
      %56 = vst [vmem:[#allocation4] sm:$0xff] -inf
    $region33: #{tpu_custom_call.1} parent=1 // pred_fallthru
      _
    %v57 = vld [vmem:[%s0] sm:$0xff]
    %v58 = vld [vmem:[%s0 + $0x8] sm:$0xff]
    %v59 = vld [vmem:[%s0 + $0x10] sm:$0xff]
    %v60 = vld [vmem:[%s0 + $0x18] sm:$0xff]
    %v61 = vld [vmem:[%s0 + $0x20] sm:$0xff]
    %v62 = vld [vmem:[%s0 + $0x28] sm:$0xff]
    %v63 = vld [vmem:[%s0 + $0x30] sm:$0xff]
    %v64 = vld [vmem:[%s0 + $0x38] sm:$0xff]
    %v65 = vld [vmem:[%s1] sm:$0xff]
    %v66 = vld [vmem:[%s1 + $0x8] sm:$0xff]
    %v67 = vld [vmem:[%s1 + $0x10] sm:$0xff]
    %v68 = vld [vmem:[%s1 + $0x18] sm:$0xff]
    %v69 = vld [vmem:[%s1 + $0x20] sm:$0xff]
    %v70 = vld [vmem:[%s1 + $0x28] sm:$0xff]
    %v71 = vld [vmem:[%s1 + $0x30] sm:$0xff]
    %v72 = vld [vmem:[%s1 + $0x38] sm:$0xff]
    %v73 = vld [vmem:[%s1 + $0x40] sm:$0xff]
    %v74 = vld [vmem:[%s1 + $0x48] sm:$0xff]
    %v75 = vld [vmem:[%s1 + $0x50] sm:$0xff]
    %v76 = vld [vmem:[%s1 + $0x58] sm:$0xff]
    %v77 = vld [vmem:[#allocation5] sm:$0x7]
    %v79 = vperm.slane %v77, 0
    %v80 = vperm.slane %v77, 1
    %v81 = vperm.slane %v77, 2
    %vm85 = vcmask 261120
    %v87 = vsel %vm85, %v57, 0
    %v90 = vsel %vm85, %v58, 0
    %v93 = vsel %vm85, %v59, 0
    %v96 = vsel %vm85, %v60, 0
    %v99 = vsel %vm85, %v61, 0
    %v102 = vsel %vm85, %v62, 0
    %v105 = vsel %vm85, %v63, 0
    %v108 = vsel %vm85, %v64, 0
    %110 = vmatpush.msra.mxu0 0.0
    %111 = vmatpush.msra.mxu0 0.0
    %112 = vmatpush.msra.mxu0 0.0
    %113 = vmatpush.msra.mxu0 0.0
    %114 = vmatpush.msra.mxu0 0.0
    %115 = vmatpush.msra.mxu0 0.0
    %116 = vmatpush.msra.mxu0 0.0
    %117 = vmatpush.msra.mxu0 0.0
    %118 = vmatpush.msra.mxu0 0.0
    %119 = vmatpush.msra.mxu0 0.0
    %120 = vmatpush.msra.mxu0 0.0
    %121 = vmatpush.msra.mxu0 0.0
    %122 = vmatpush.msra.mxu0 %v74
    %123 = vmatpush.msra.mxu0 %v71
    %124 = vmatpush.msra.mxu0 %v68
    %125 = vmatpush.msra.mxu0 %v65
    %126 = vmatmul.f32.gmra.mxu0 %v87
    %v127 = vpop.f32.mrf.mxu0
    %v128 = vadd.f32 %v79, %v127
    %129 = vmatmul.f32.gmra.mxu0 %v90
    %v130 = vpop.f32.mrf.mxu0
    %v131 = vadd.f32 %v79, %v130
    %132 = vmatmul.f32.gmra.mxu0 %v93
    %v133 = vpop.f32.mrf.mxu0
    %v134 = vadd.f32 %v79, %v133
    %135 = vmatmul.f32.gmra.mxu0 %v96
    %v136 = vpop.f32.mrf.mxu0
    %v137 = vadd.f32 %v79, %v136
    %138 = vmatmul.f32.gmra.mxu0 %v99
    %v139 = vpop.f32.mrf.mxu0
    %v140 = vadd.f32 %v79, %v139
    %141 = vmatmul.f32.gmra.mxu0 %v102
    %v142 = vpop.f32.mrf.mxu0
    %v143 = vadd.f32 %v79, %v142
    %144 = vmatmul.f32.gmra.mxu0 %v105
    %v145 = vpop.f32.mrf.mxu0
    %v146 = vadd.f32 %v79, %v145
    %147 = vmatmul.f32.gmra.mxu0 %v108
    %v148 = vpop.f32.mrf.mxu0
    %v149 = vadd.f32 %v79, %v148
    %150 = vdwg.mxu0
    %151 = vmatpush.msra.mxu0 0.0
    %152 = vmatpush.msra.mxu0 0.0
    %153 = vmatpush.msra.mxu0 0.0
    %154 = vmatpush.msra.mxu0 0.0
    %155 = vmatpush.msra.mxu0 0.0
    %156 = vmatpush.msra.mxu0 0.0
    %157 = vmatpush.msra.mxu0 0.0
    %158 = vmatpush.msra.mxu0 0.0
    %159 = vmatpush.msra.mxu0 0.0
    %160 = vmatpush.msra.mxu0 0.0
    %161 = vmatpush.msra.mxu0 0.0
    %162 = vmatpush.msra.mxu0 0.0
    %163 = vmatpush.msra.mxu0 %v75
    %164 = vmatpush.msra.mxu0 %v72
    %165 = vmatpush.msra.mxu0 %v69
    %166 = vmatpush.msra.mxu0 %v66
    %167 = vmatmul.f32.gmra.mxu0 %v87
    %v168 = vpop.f32.mrf.mxu0
    %v169 = vadd.f32 %v80, %v168
    %170 = vmatmul.f32.gmra.mxu0 %v90
    %v171 = vpop.f32.mrf.mxu0
    %v172 = vadd.f32 %v80, %v171
    %173 = vmatmul.f32.gmra.mxu0 %v93
    %v174 = vpop.f32.mrf.mxu0
    %v175 = vadd.f32 %v80, %v174
    %176 = vmatmul.f32.gmra.mxu0 %v96
    %v177 = vpop.f32.mrf.mxu0
    %v178 = vadd.f32 %v80, %v177
    %179 = vmatmul.f32.gmra.mxu0 %v99
    %v180 = vpop.f32.mrf.mxu0
    %v181 = vadd.f32 %v80, %v180
    %182 = vmatmul.f32.gmra.mxu0 %v102
    %v183 = vpop.f32.mrf.mxu0
    %v184 = vadd.f32 %v80, %v183
    %185 = vmatmul.f32.gmra.mxu0 %v105
    %v186 = vpop.f32.mrf.mxu0
    %v187 = vadd.f32 %v80, %v186
    %188 = vmatmul.f32.gmra.mxu0 %v108
    %v189 = vpop.f32.mrf.mxu0
    %v190 = vadd.f32 %v80, %v189
    %191 = vdwg.mxu0
    %192 = vmatpush.msra.mxu0 0.0
    %193 = vmatpush.msra.mxu0 0.0
    %194 = vmatpush.msra.mxu0 0.0
    %195 = vmatpush.msra.mxu0 0.0
    %196 = vmatpush.msra.mxu0 0.0
    %197 = vmatpush.msra.mxu0 0.0
    %198 = vmatpush.msra.mxu0 0.0
    %199 = vmatpush.msra.mxu0 0.0
    %200 = vmatpush.msra.mxu0 0.0
    %201 = vmatpush.msra.mxu0 0.0
    %202 = vmatpush.msra.mxu0 0.0
    %203 = vmatpush.msra.mxu0 0.0
    %204 = vmatpush.msra.mxu0 %v76
    %205 = vmatpush.msra.mxu0 %v73
    %206 = vmatpush.msra.mxu0 %v70
    %207 = vmatpush.msra.mxu0 %v67
    %208 = vmatmul.f32.gmra.mxu0 %v87
    %v209 = vpop.f32.mrf.mxu0
    %v210 = vadd.f32 %v81, %v209
    %211 = vmatmul.f32.gmra.mxu0 %v90
    %v212 = vpop.f32.mrf.mxu0
    %v213 = vadd.f32 %v81, %v212
    %214 = vmatmul.f32.gmra.mxu0 %v93
    %v215 = vpop.f32.mrf.mxu0
    %v216 = vadd.f32 %v81, %v215
    %217 = vmatmul.f32.gmra.mxu0 %v96
    %v218 = vpop.f32.mrf.mxu0
    %v219 = vadd.f32 %v81, %v218
    %220 = vmatmul.f32.gmra.mxu0 %v99
    %v221 = vpop.f32.mrf.mxu0
    %v222 = vadd.f32 %v81, %v221
    %223 = vmatmul.f32.gmra.mxu0 %v102
    %v224 = vpop.f32.mrf.mxu0
    %v225 = vadd.f32 %v81, %v224
    %226 = vmatmul.f32.gmra.mxu0 %v105
    %v227 = vpop.f32.mrf.mxu0
    %v228 = vadd.f32 %v81, %v227
    %229 = vmatmul.f32.gmra.mxu0 %v108
    %v230 = vpop.f32.mrf.mxu0
    %v231 = vadd.f32 %v81, %v230
    %232 = vdwg.mxu0
    %233 = vst [vmem:[#allocation2] sm:$0xff] %v128
    %234 = vst [vmem:[#allocation2 + $0x8] sm:$0xff] %v169
    %235 = vst [vmem:[#allocation2 + $0x10] sm:$0xff] %v210
    %236 = vst [vmem:[#allocation2 + $0x18] sm:$0xff] %v131
    %237 = vst [vmem:[#allocation2 + $0x20] sm:$0xff] %v172
    %238 = vst [vmem:[#allocation2 + $0x28] sm:$0xff] %v213
    %239 = vst [vmem:[#allocation2 + $0x30] sm:$0xff] %v134
    %240 = vst [vmem:[#allocation2 + $0x38] sm:$0xff] %v175
    %241 = vst [vmem:[#allocation2 + $0x40] sm:$0xff] %v216
    %242 = vst [vmem:[#allocation2 + $0x48] sm:$0xff] %v137
    %243 = vst [vmem:[#allocation2 + $0x50] sm:$0xff] %v178
    %244 = vst [vmem:[#allocation2 + $0x58] sm:$0xff] %v219
    %245 = vst [vmem:[#allocation2 + $0x60] sm:$0xff] %v140
    %246 = vst [vmem:[#allocation2 + $0x68] sm:$0xff] %v181
    %247 = vst [vmem:[#allocation2 + $0x70] sm:$0xff] %v222
    %248 = vst [vmem:[#allocation2 + $0x78] sm:$0xff] %v143
    %249 = vst [vmem:[#allocation2 + $0x80] sm:$0xff] %v184
    %250 = vst [vmem:[#allocation2 + $0x88] sm:$0xff] %v225
    %251 = vst [vmem:[#allocation2 + $0x90] sm:$0xff] %v146
    %252 = vst [vmem:[#allocation2 + $0x98] sm:$0xff] %v187
    %253 = vst [vmem:[#allocation2 + $0xa0] sm:$0xff] %v228
    %254 = vst [vmem:[#allocation2 + $0xa8] sm:$0xff] %v149
    %255 = vst [vmem:[#allocation2 + $0xb0] sm:$0xff] %v190
    %256 = vst [vmem:[#allocation2 + $0xb8] sm:$0xff] %v231
    %v257 = vld [vmem:[%s4] sm:$0x1]
    %v258 = vld [vmem:[#allocation3] sm:$0xff]
    %v259 = vld [vmem:[#allocation4] sm:$0xff]
    %s260 = smul.u32 0, 3
    %s261 = smul.addr %s260, 8
    %s262 = scalar_lea.vmem [#allocation2], %s261
    %v263 = vld [vmem:[%s262] sm:$0xff]
    %v264 = vld [vmem:[%s262 + $0x8] sm:$0xff]
    %v265 = vld [vmem:[%s262 + $0x10] sm:$0xff]
    %v266 = vld [vmem:[#allocation8] sm:$0xff]
    %v267 = vld [vmem:[#allocation8 + $0x8] sm:$0xff]
    %v268 = vld [vmem:[#allocation8 + $0x18] sm:$0xff]
    %v269 = vld [vmem:[#allocation8 + $0x20] sm:$0xff]
    %v270 = vld [vmem:[#allocation8 + $0x30] sm:$0xff]
    %v271 = vld [vmem:[#allocation8 + $0x38] sm:$0xff]
    %v272 = vld [vmem:[#allocation8 + $0x48] sm:$0xff]
    %v273 = vld [vmem:[#allocation8 + $0x50] sm:$0xff]
    %v274 = vld [vmem:[#allocation8 + $0x60] sm:$0xff]
    %v275 = vld [vmem:[#allocation8 + $0x68] sm:$0xff]
    %v276 = vld [vmem:[#allocation8 + $0x78] sm:$0xff]
    %v277 = vld [vmem:[#allocation8 + $0x80] sm:$0xff]
    %v278 = vld [vmem:[#allocation8 + $0x90] sm:$0xff]
    %v279 = vld [vmem:[#allocation8 + $0x98] sm:$0xff]
    %v280 = vld [vmem:[#allocation8 + $0xa8] sm:$0xff]
    %v281 = vld [vmem:[#allocation8 + $0xb0] sm:$0xff]
    %v282 = vld [vmem:[#allocation8 + $0xc0] sm:$0xff]
    %v283 = vld [vmem:[#allocation8 + $0xc8] sm:$0xff]
    %v284 = vld [vmem:[#allocation8 + $0xd8] sm:$0xff]
    %v285 = vld [vmem:[#allocation8 + $0xe0] sm:$0xff]
    %v286 = vld [vmem:[#allocation8 + $0xf0] sm:$0xff]
    %v287 = vld [vmem:[#allocation8 + $0xf8] sm:$0xff]
    %v288 = vld [vmem:[#allocation8 + $0x108] sm:$0xff]
    %v289 = vld [vmem:[#allocation8 + $0x110] sm:$0xff]
    %v290 = vld [vmem:[#allocation8 + $0x120] sm:$0xff]
    %v291 = vld [vmem:[#allocation8 + $0x128] sm:$0xff]
    %v292 = vld [vmem:[#allocation8 + $0x138] sm:$0xff]
    %v293 = vld [vmem:[#allocation8 + $0x140] sm:$0xff]
    %v294 = vld [vmem:[#allocation8 + $0x150] sm:$0xff]
    %v295 = vld [vmem:[#allocation8 + $0x158] sm:$0xff]
    %v296 = vld [vmem:[#allocation8 + $0x168] sm:$0xff]
    %v297 = vld [vmem:[#allocation8 + $0x170] sm:$0xff]
    %298 = vmatpush.msra.mxu0 %v296
    %299 = vmatpush.msra.mxu0 %v294
    %300 = vmatpush.msra.mxu0 %v292
    %301 = vmatpush.msra.mxu0 %v290
    %302 = vmatpush.msra.mxu0 %v288
    %303 = vmatpush.msra.mxu0 %v286
    %304 = vmatpush.msra.mxu0 %v284
    %305 = vmatpush.msra.mxu0 %v282
    %306 = vmatpush.msra.mxu0 %v280
    %307 = vmatpush.msra.mxu0 %v278
    %308 = vmatpush.msra.mxu0 %v276
    %309 = vmatpush.msra.mxu0 %v274
    %310 = vmatpush.msra.mxu0 %v272
    %311 = vmatpush.msra.mxu0 %v270
    %312 = vmatpush.msra.mxu0 %v268
    %313 = vmatpush.msra.mxu0 %v266
    %314 = vmatmul.f32.gmra.mxu0 %v258
    %v315 = vpop.f32.mrf.mxu0
    %v316 = vadd.f32 0.0, %v315
    %317 = vdwg.mxu0
    %318 = vmatpush.msra.mxu0 %v297
    %319 = vmatpush.msra.mxu0 %v295
    %320 = vmatpush.msra.mxu0 %v293
    %321 = vmatpush.msra.mxu0 %v291
    %322 = vmatpush.msra.mxu0 %v289
    %323 = vmatpush.msra.mxu0 %v287
    %324 = vmatpush.msra.mxu0 %v285
    %325 = vmatpush.msra.mxu0 %v283
    %326 = vmatpush.msra.mxu0 %v281
    %327 = vmatpush.msra.mxu0 %v279
    %328 = vmatpush.msra.mxu0 %v277
    %329 = vmatpush.msra.mxu0 %v275
    %330 = vmatpush.msra.mxu0 %v273
    %331 = vmatpush.msra.mxu0 %v271
    %332 = vmatpush.msra.mxu0 %v269
    %333 = vmatpush.msra.mxu0 %v267
    %334 = vmatmul.f32.gmra.mxu0 %v258
    %v335 = vpop.f32.mrf.mxu0
    %v336 = vadd.f32 0.0, %v335
    %337 = vdwg.mxu0
    %v338 = vadd.f32 %v263, %v316
    %v339 = vxor.u32 %v338, 2147483648
    %v340 = vmul.f32 %v339, 1.442695
    %v341 = vpow.pop %v340
    %v342 = vadd.f32 %v341, 1.0
    %v343 = vrcp.pop %v342
    %v344 = vmul.f32 %v342, %v343
    %v345 = vsub.f32 1.0, %v344
    %v346 = vmul.f32 %v343, %v345
    %v347 = vadd.f32 %v343, %v346
    %vm348 = vweird.f32 %v342
    %vm349 = vweird.f32 %v343
    %vm350 = vmor %vm348, %vm349
    %v351 = vsel %vm350, %v343, %v347
    %v352 = vand.u32 2147483647, %v342
    %vm353 = vcmp.eq.f32.partialorder %v352, 8.507059e+37
    %v354 = vand.u32 %v342, 2147483648
    %v355 = vor.u32 1.1754944e-38, %v354
    %v356 = vsel %vm353, %v355, %v351
    %v357 = vmul.f32 1.0, %v356
    %v358 = vadd.f32 %v264, %v336
    %v359 = vxor.u32 %v358, 2147483648
    %v360 = vmul.f32 %v359, 1.442695
    %v361 = vpow.pop %v360
    %v362 = vadd.f32 %v361, 1.0
    %v363 = vrcp.pop %v362
    %v364 = vmul.f32 %v362, %v363
    %v365 = vsub.f32 1.0, %v364
    %v366 = vmul.f32 %v363, %v365
    %v367 = vadd.f32 %v363, %v366
    %vm368 = vweird.f32 %v362
    %vm369 = vweird.f32 %v363
    %vm370 = vmor %vm368, %vm369
    %v371 = vsel %vm370, %v363, %v367
    %v372 = vand.u32 2147483647, %v362
    %vm373 = vcmp.eq.f32.partialorder %v372, 8.507059e+37
    %v374 = vand.u32 %v362, 2147483648
    %v375 = vor.u32 1.1754944e-38, %v374
    %v376 = vsel %vm373, %v375, %v371
    %v377 = vmul.f32 1.0, %v376
    %v378 = vld [vmem:[#allocation8 + $0x10] sm:$0xff]
    %v379 = vld [vmem:[#allocation8 + $0x28] sm:$0xff]
    %v380 = vld [vmem:[#allocation8 + $0x40] sm:$0xff]
    %v381 = vld [vmem:[#allocation8 + $0x58] sm:$0xff]
    %v382 = vld [vmem:[#allocation8 + $0x70] sm:$0xff]
    %v383 = vld [vmem:[#allocation8 + $0x88] sm:$0xff]
    %v384 = vld [vmem:[#allocation8 + $0xa0] sm:$0xff]
    %v385 = vld [vmem:[#allocation8 + $0xb8] sm:$0xff]
    %v386 = vld [vmem:[#allocation8 + $0xd0] sm:$0xff]
    %v387 = vld [vmem:[#allocation8 + $0xe8] sm:$0xff]
    %v388 = vld [vmem:[#allocation8 + $0x100] sm:$0xff]
    %v389 = vld [vmem:[#allocation8 + $0x118] sm:$0xff]
    %v390 = vld [vmem:[#allocation8 + $0x130] sm:$0xff]
    %v391 = vld [vmem:[#allocation8 + $0x148] sm:$0xff]
    %v392 = vld [vmem:[#allocation8 + $0x160] sm:$0xff]
    %v393 = vld [vmem:[#allocation8 + $0x178] sm:$0xff]
    %v395 = vperm.slane %v257, 0
    %397 = vmatpush.msra.mxu0 %v393
    %398 = vmatpush.msra.mxu0 %v392
    %399 = vmatpush.msra.mxu0 %v391
    %400 = vmatpush.msra.mxu0 %v390
    %401 = vmatpush.msra.mxu0 %v389
    %402 = vmatpush.msra.mxu0 %v388
    %403 = vmatpush.msra.mxu0 %v387
    %404 = vmatpush.msra.mxu0 %v386
    %405 = vmatpush.msra.mxu0 %v385
    %406 = vmatpush.msra.mxu0 %v384
    %407 = vmatpush.msra.mxu0 %v383
    %408 = vmatpush.msra.mxu0 %v382
    %409 = vmatpush.msra.mxu0 %v381
    %410 = vmatpush.msra.mxu0 %v380
    %411 = vmatpush.msra.mxu0 %v379
    %412 = vmatpush.msra.mxu0 %v378
    %413 = vmatmul.f32.gmra.mxu0 %v258
    %v414 = vpop.f32.mrf.mxu0
    %v415 = vadd.f32 %v395, %v414
    %416 = vdwg.mxu0
    %v417 = vmul.f32 %v357, %v415
    %v418 = vadd.f32 %v265, %v417
    %v419 = vtanh.pop %v418
    %v420 = vsub.f32 1.0, %v377
    %v421 = vmul.f32 %v420, %v419
    %v422 = vmul.f32 %v377, %v258
    %v423 = vadd.f32 %v421, %v422
    %v424 = vmax.f32 %v259, %v423
    %s425 = smul.u32 1, 3
    %s426 = smul.addr %s425, 8
    %s427 = scalar_lea.vmem [#allocation2], %s426
    %v428 = vld [vmem:[%s427] sm:$0xff]
    %v429 = vld [vmem:[%s427 + $0x8] sm:$0xff]
    %v430 = vld [vmem:[%s427 + $0x10] sm:$0xff]
    %431 = vmatpush.msra.mxu0 %v296
    %432 = vmatpush.msra.mxu0 %v294
    %433 = vmatpush.msra.mxu0 %v292
    %434 = vmatpush.msra.mxu0 %v290
    %435 = vmatpush.msra.mxu0 %v288
    %436 = vmatpush.msra.mxu0 %v286
    %437 = vmatpush.msra.mxu0 %v284
    %438 = vmatpush.msra.mxu0 %v282
    %439 = vmatpush.msra.mxu0 %v280
    %440 = vmatpush.msra.mxu0 %v278
    %441 = vmatpush.msra.mxu0 %v276
    %442 = vmatpush.msra.mxu0 %v274
    %443 = vmatpush.msra.mxu0 %v272
    %444 = vmatpush.msra.mxu0 %v270
    %445 = vmatpush.msra.mxu0 %v268
    %446 = vmatpush.msra.mxu0 %v266
    %447 = vmatmul.f32.gmra.mxu0 %v423
    %v448 = vpop.f32.mrf.mxu0
    %v449 = vadd.f32 0.0, %v448
    %450 = vdwg.mxu0
    %451 = vmatpush.msra.mxu0 %v297
    %452 = vmatpush.msra.mxu0 %v295
    %453 = vmatpush.msra.mxu0 %v293
    %454 = vmatpush.msra.mxu0 %v291
    %455 = vmatpush.msra.mxu0 %v289
    %456 = vmatpush.msra.mxu0 %v287
    %457 = vmatpush.msra.mxu0 %v285
    %458 = vmatpush.msra.mxu0 %v283
    %459 = vmatpush.msra.mxu0 %v281
    %460 = vmatpush.msra.mxu0 %v279
    %461 = vmatpush.msra.mxu0 %v277
    %462 = vmatpush.msra.mxu0 %v275
    %463 = vmatpush.msra.mxu0 %v273
    %464 = vmatpush.msra.mxu0 %v271
    %465 = vmatpush.msra.mxu0 %v269
    %466 = vmatpush.msra.mxu0 %v267
    %467 = vmatmul.f32.gmra.mxu0 %v423
    %v468 = vpop.f32.mrf.mxu0
    %v469 = vadd.f32 0.0, %v468
    %470 = vdwg.mxu0
    %v471 = vadd.f32 %v428, %v449
    %v472 = vxor.u32 %v471, 2147483648
    %v473 = vmul.f32 %v472, 1.442695
    %v474 = vpow.pop %v473
    %v475 = vadd.f32 %v474, 1.0
    %v476 = vrcp.pop %v475
    %v477 = vmul.f32 %v475, %v476
    %v478 = vsub.f32 1.0, %v477
    %v479 = vmul.f32 %v476, %v478
    %v480 = vadd.f32 %v476, %v479
    %vm481 = vweird.f32 %v475
    %vm482 = vweird.f32 %v476
    %vm483 = vmor %vm481, %vm482
    %v484 = vsel %vm483, %v476, %v480
    %v485 = vand.u32 2147483647, %v475
    %vm486 = vcmp.eq.f32.partialorder %v485, 8.507059e+37
    %v487 = vand.u32 %v475, 2147483648
    %v488 = vor.u32 1.1754944e-38, %v487
    %v489 = vsel %vm486, %v488, %v484
    %v490 = vmul.f32 1.0, %v489
    %v491 = vadd.f32 %v429, %v469
    %v492 = vxor.u32 %v491, 2147483648
    %v493 = vmul.f32 %v492, 1.442695
    %v494 = vpow.pop %v493
    %v495 = vadd.f32 %v494, 1.0
    %v496 = vrcp.pop %v495
    %v497 = vmul.f32 %v495, %v496
    %v498 = vsub.f32 1.0, %v497
    %v499 = vmul.f32 %v496, %v498
    %v500 = vadd.f32 %v496, %v499
    %vm501 = vweird.f32 %v495
    %vm502 = vweird.f32 %v496
    %vm503 = vmor %vm501, %vm502
    %v504 = vsel %vm503, %v496, %v500
    %v505 = vand.u32 2147483647, %v495
    %vm506 = vcmp.eq.f32.partialorder %v505, 8.507059e+37
    %v507 = vand.u32 %v495, 2147483648
    %v508 = vor.u32 1.1754944e-38, %v507
    %v509 = vsel %vm506, %v508, %v504
    %v510 = vmul.f32 1.0, %v509
    %511 = vmatpush.msra.mxu0 %v393
    %512 = vmatpush.msra.mxu0 %v392
    %513 = vmatpush.msra.mxu0 %v391
    %514 = vmatpush.msra.mxu0 %v390
    %515 = vmatpush.msra.mxu0 %v389
    %516 = vmatpush.msra.mxu0 %v388
    %517 = vmatpush.msra.mxu0 %v387
    %518 = vmatpush.msra.mxu0 %v386
    %519 = vmatpush.msra.mxu0 %v385
    %520 = vmatpush.msra.mxu0 %v384
    %521 = vmatpush.msra.mxu0 %v383
    %522 = vmatpush.msra.mxu0 %v382
    %523 = vmatpush.msra.mxu0 %v381
    %524 = vmatpush.msra.mxu0 %v380
    %525 = vmatpush.msra.mxu0 %v379
    %526 = vmatpush.msra.mxu0 %v378
    %527 = vmatmul.f32.gmra.mxu0 %v423
    %v528 = vpop.f32.mrf.mxu0
    %v529 = vadd.f32 %v395, %v528
    %530 = vdwg.mxu0
    %v531 = vmul.f32 %v490, %v529
    %v532 = vadd.f32 %v430, %v531
    %v533 = vtanh.pop %v532
    %v534 = vsub.f32 1.0, %v510
    %v535 = vmul.f32 %v534, %v533
    %v536 = vmul.f32 %v510, %v423
    %v537 = vadd.f32 %v535, %v536
    %v538 = vmax.f32 %v424, %v537
    %s539 = smul.u32 2, 3
    %s540 = smul.addr %s539, 8
    %s541 = scalar_lea.vmem [#allocation2], %s540
    %v542 = vld [vmem:[%s541] sm:$0xff]
    %v543 = vld [vmem:[%s541 + $0x8] sm:$0xff]
    %v544 = vld [vmem:[%s541 + $0x10] sm:$0xff]
    %545 = vmatpush.msra.mxu0 %v296
    %546 = vmatpush.msra.mxu0 %v294
    %547 = vmatpush.msra.mxu0 %v292
    %548 = vmatpush.msra.mxu0 %v290
    %549 = vmatpush.msra.mxu0 %v288
    %550 = vmatpush.msra.mxu0 %v286
    %551 = vmatpush.msra.mxu0 %v284
    %552 = vmatpush.msra.mxu0 %v282
    %553 = vmatpush.msra.mxu0 %v280
    %554 = vmatpush.msra.mxu0 %v278
    %555 = vmatpush.msra.mxu0 %v276
    %556 = vmatpush.msra.mxu0 %v274
    %557 = vmatpush.msra.mxu0 %v272
    %558 = vmatpush.msra.mxu0 %v270
    %559 = vmatpush.msra.mxu0 %v268
    %560 = vmatpush.msra.mxu0 %v266
    %561 = vmatmul.f32.gmra.mxu0 %v537
    %v562 = vpop.f32.mrf.mxu0
    %v563 = vadd.f32 0.0, %v562
    %564 = vdwg.mxu0
    %565 = vmatpush.msra.mxu0 %v297
    %566 = vmatpush.msra.mxu0 %v295
    %567 = vmatpush.msra.mxu0 %v293
    %568 = vmatpush.msra.mxu0 %v291
    %569 = vmatpush.msra.mxu0 %v289
    %570 = vmatpush.msra.mxu0 %v287
    %571 = vmatpush.msra.mxu0 %v285
    %572 = vmatpush.msra.mxu0 %v283
    %573 = vmatpush.msra.mxu0 %v281
    %574 = vmatpush.msra.mxu0 %v279
    %575 = vmatpush.msra.mxu0 %v277
    %576 = vmatpush.msra.mxu0 %v275
    %577 = vmatpush.msra.mxu0 %v273
    %578 = vmatpush.msra.mxu0 %v271
    %579 = vmatpush.msra.mxu0 %v269
    %580 = vmatpush.msra.mxu0 %v267
    %581 = vmatmul.f32.gmra.mxu0 %v537
    %v582 = vpop.f32.mrf.mxu0
    %v583 = vadd.f32 0.0, %v582
    %584 = vdwg.mxu0
    %v585 = vadd.f32 %v542, %v563
    %v586 = vxor.u32 %v585, 2147483648
    %v587 = vmul.f32 %v586, 1.442695
    %v588 = vpow.pop %v587
    %v589 = vadd.f32 %v588, 1.0
    %v590 = vrcp.pop %v589
    %v591 = vmul.f32 %v589, %v590
    %v592 = vsub.f32 1.0, %v591
    %v593 = vmul.f32 %v590, %v592
    %v594 = vadd.f32 %v590, %v593
    %vm595 = vweird.f32 %v589
    %vm596 = vweird.f32 %v590
    %vm597 = vmor %vm595, %vm596
    %v598 = vsel %vm597, %v590, %v594
    %v599 = vand.u32 2147483647, %v589
    %vm600 = vcmp.eq.f32.partialorder %v599, 8.507059e+37
    %v601 = vand.u32 %v589, 2147483648
    %v602 = vor.u32 1.1754944e-38, %v601
    %v603 = vsel %vm600, %v602, %v598
    %v604 = vmul.f32 1.0, %v603
    %v605 = vadd.f32 %v543, %v583
    %v606 = vxor.u32 %v605, 2147483648
    %v607 = vmul.f32 %v606, 1.442695
    %v608 = vpow.pop %v607
    %v609 = vadd.f32 %v608, 1.0
    %v610 = vrcp.pop %v609
    %v611 = vmul.f32 %v609, %v610
    %v612 = vsub.f32 1.0, %v611
    %v613 = vmul.f32 %v610, %v612
    %v614 = vadd.f32 %v610, %v613
    %vm615 = vweird.f32 %v609
    %vm616 = vweird.f32 %v610
    %vm617 = vmor %vm615, %vm616
    %v618 = vsel %vm617, %v610, %v614
    %v619 = vand.u32 2147483647, %v609
    %vm620 = vcmp.eq.f32.partialorder %v619, 8.507059e+37
    %v621 = vand.u32 %v609, 2147483648
    %v622 = vor.u32 1.1754944e-38, %v621
    %v623 = vsel %vm620, %v622, %v618
    %v624 = vmul.f32 1.0, %v623
    %625 = vmatpush.msra.mxu0 %v393
    %626 = vmatpush.msra.mxu0 %v392
    %627 = vmatpush.msra.mxu0 %v391
    %628 = vmatpush.msra.mxu0 %v390
    %629 = vmatpush.msra.mxu0 %v389
    %630 = vmatpush.msra.mxu0 %v388
    %631 = vmatpush.msra.mxu0 %v387
    %632 = vmatpush.msra.mxu0 %v386
    %633 = vmatpush.msra.mxu0 %v385
    %634 = vmatpush.msra.mxu0 %v384
    %635 = vmatpush.msra.mxu0 %v383
    %636 = vmatpush.msra.mxu0 %v382
    %637 = vmatpush.msra.mxu0 %v381
    %638 = vmatpush.msra.mxu0 %v380
    %639 = vmatpush.msra.mxu0 %v379
    %640 = vmatpush.msra.mxu0 %v378
    %641 = vmatmul.f32.gmra.mxu0 %v537
    %v642 = vpop.f32.mrf.mxu0
    %v643 = vadd.f32 %v395, %v642
    %644 = vdwg.mxu0
    %v645 = vmul.f32 %v604, %v643
    %v646 = vadd.f32 %v544, %v645
    %v647 = vtanh.pop %v646
    %v648 = vsub.f32 1.0, %v624
    %v649 = vmul.f32 %v648, %v647
    %v650 = vmul.f32 %v624, %v537
    %v651 = vadd.f32 %v649, %v650
    %v652 = vmax.f32 %v538, %v651
    %s653 = smul.u32 3, 3
    %s654 = smul.addr %s653, 8
    %s655 = scalar_lea.vmem [#allocation2], %s654
    %v656 = vld [vmem:[%s655] sm:$0xff]
    %v657 = vld [vmem:[%s655 + $0x8] sm:$0xff]
    %v658 = vld [vmem:[%s655 + $0x10] sm:$0xff]
    %659 = vmatpush.msra.mxu0 %v296
    %660 = vmatpush.msra.mxu0 %v294
    %661 = vmatpush.msra.mxu0 %v292
    %662 = vmatpush.msra.mxu0 %v290
    %663 = vmatpush.msra.mxu0 %v288
    %664 = vmatpush.msra.mxu0 %v286
    %665 = vmatpush.msra.mxu0 %v284
    %666 = vmatpush.msra.mxu0 %v282
    %667 = vmatpush.msra.mxu0 %v280
    %668 = vmatpush.msra.mxu0 %v278
    %669 = vmatpush.msra.mxu0 %v276
    %670 = vmatpush.msra.mxu0 %v274
    %671 = vmatpush.msra.mxu0 %v272
    %672 = vmatpush.msra.mxu0 %v270
    %673 = vmatpush.msra.mxu0 %v268
    %674 = vmatpush.msra.mxu0 %v266
    %675 = vmatmul.f32.gmra.mxu0 %v651
    %v676 = vpop.f32.mrf.mxu0
    %v677 = vadd.f32 0.0, %v676
    %678 = vdwg.mxu0
    %679 = vmatpush.msra.mxu0 %v297
    %680 = vmatpush.msra.mxu0 %v295
    %681 = vmatpush.msra.mxu0 %v293
    %682 = vmatpush.msra.mxu0 %v291
    %683 = vmatpush.msra.mxu0 %v289
    %684 = vmatpush.msra.mxu0 %v287
    %685 = vmatpush.msra.mxu0 %v285
    %686 = vmatpush.msra.mxu0 %v283
    %687 = vmatpush.msra.mxu0 %v281
    %688 = vmatpush.msra.mxu0 %v279
    %689 = vmatpush.msra.mxu0 %v277
    %690 = vmatpush.msra.mxu0 %v275
    %691 = vmatpush.msra.mxu0 %v273
    %692 = vmatpush.msra.mxu0 %v271
    %693 = vmatpush.msra.mxu0 %v269
    %694 = vmatpush.msra.mxu0 %v267
    %695 = vmatmul.f32.gmra.mxu0 %v651
    %v696 = vpop.f32.mrf.mxu0
    %v697 = vadd.f32 0.0, %v696
    %698 = vdwg.mxu0
    %v699 = vadd.f32 %v656, %v677
    %v700 = vxor.u32 %v699, 2147483648
    %v701 = vmul.f32 %v700, 1.442695
    %v702 = vpow.pop %v701
    %v703 = vadd.f32 %v702, 1.0
    %v704 = vrcp.pop %v703
    %v705 = vmul.f32 %v703, %v704
    %v706 = vsub.f32 1.0, %v705
    %v707 = vmul.f32 %v704, %v706
    %v708 = vadd.f32 %v704, %v707
    %vm709 = vweird.f32 %v703
    %vm710 = vweird.f32 %v704
    %vm711 = vmor %vm709, %vm710
    %v712 = vsel %vm711, %v704, %v708
    %v713 = vand.u32 2147483647, %v703
    %vm714 = vcmp.eq.f32.partialorder %v713, 8.507059e+37
    %v715 = vand.u32 %v703, 2147483648
    %v716 = vor.u32 1.1754944e-38, %v715
    %v717 = vsel %vm714, %v716, %v712
    %v718 = vmul.f32 1.0, %v717
    %v719 = vadd.f32 %v657, %v697
    %v720 = vxor.u32 %v719, 2147483648
    %v721 = vmul.f32 %v720, 1.442695
    %v722 = vpow.pop %v721
    %v723 = vadd.f32 %v722, 1.0
    %v724 = vrcp.pop %v723
    %v725 = vmul.f32 %v723, %v724
    %v726 = vsub.f32 1.0, %v725
    %v727 = vmul.f32 %v724, %v726
    %v728 = vadd.f32 %v724, %v727
    %vm729 = vweird.f32 %v723
    %vm730 = vweird.f32 %v724
    %vm731 = vmor %vm729, %vm730
    %v732 = vsel %vm731, %v724, %v728
    %v733 = vand.u32 2147483647, %v723
    %vm734 = vcmp.eq.f32.partialorder %v733, 8.507059e+37
    %v735 = vand.u32 %v723, 2147483648
    %v736 = vor.u32 1.1754944e-38, %v735
    %v737 = vsel %vm734, %v736, %v732
    %v738 = vmul.f32 1.0, %v737
    %739 = vmatpush.msra.mxu0 %v393
    %740 = vmatpush.msra.mxu0 %v392
    %741 = vmatpush.msra.mxu0 %v391
    %742 = vmatpush.msra.mxu0 %v390
    %743 = vmatpush.msra.mxu0 %v389
    %744 = vmatpush.msra.mxu0 %v388
    %745 = vmatpush.msra.mxu0 %v387
    %746 = vmatpush.msra.mxu0 %v386
    %747 = vmatpush.msra.mxu0 %v385
    %748 = vmatpush.msra.mxu0 %v384
    %749 = vmatpush.msra.mxu0 %v383
    %750 = vmatpush.msra.mxu0 %v382
    %751 = vmatpush.msra.mxu0 %v381
    %752 = vmatpush.msra.mxu0 %v380
    %753 = vmatpush.msra.mxu0 %v379
    %754 = vmatpush.msra.mxu0 %v378
    %755 = vmatmul.f32.gmra.mxu0 %v651
    %v756 = vpop.f32.mrf.mxu0
    %v757 = vadd.f32 %v395, %v756
    %758 = vdwg.mxu0
    %v759 = vmul.f32 %v718, %v757
    %v760 = vadd.f32 %v658, %v759
    %v761 = vtanh.pop %v760
    %v762 = vsub.f32 1.0, %v738
    %v763 = vmul.f32 %v762, %v761
    %v764 = vmul.f32 %v738, %v651
    %v765 = vadd.f32 %v763, %v764
    %v766 = vmax.f32 %v652, %v765
    %s767 = smul.u32 4, 3
    %s768 = smul.addr %s767, 8
    %s769 = scalar_lea.vmem [#allocation2], %s768
    %v770 = vld [vmem:[%s769] sm:$0xff]
    %v771 = vld [vmem:[%s769 + $0x8] sm:$0xff]
    %v772 = vld [vmem:[%s769 + $0x10] sm:$0xff]
    %773 = vmatpush.msra.mxu0 %v296
    %774 = vmatpush.msra.mxu0 %v294
    %775 = vmatpush.msra.mxu0 %v292
    %776 = vmatpush.msra.mxu0 %v290
    %777 = vmatpush.msra.mxu0 %v288
    %778 = vmatpush.msra.mxu0 %v286
    %779 = vmatpush.msra.mxu0 %v284
    %780 = vmatpush.msra.mxu0 %v282
    %781 = vmatpush.msra.mxu0 %v280
    %782 = vmatpush.msra.mxu0 %v278
    %783 = vmatpush.msra.mxu0 %v276
    %784 = vmatpush.msra.mxu0 %v274
    %785 = vmatpush.msra.mxu0 %v272
    %786 = vmatpush.msra.mxu0 %v270
    %787 = vmatpush.msra.mxu0 %v268
    %788 = vmatpush.msra.mxu0 %v266
    %789 = vmatmul.f32.gmra.mxu0 %v765
    %v790 = vpop.f32.mrf.mxu0
    %v791 = vadd.f32 0.0, %v790
    %792 = vdwg.mxu0
    %793 = vmatpush.msra.mxu0 %v297
    %794 = vmatpush.msra.mxu0 %v295
    %795 = vmatpush.msra.mxu0 %v293
    %796 = vmatpush.msra.mxu0 %v291
    %797 = vmatpush.msra.mxu0 %v289
    %798 = vmatpush.msra.mxu0 %v287
    %799 = vmatpush.msra.mxu0 %v285
    %800 = vmatpush.msra.mxu0 %v283
    %801 = vmatpush.msra.mxu0 %v281
    %802 = vmatpush.msra.mxu0 %v279
    %803 = vmatpush.msra.mxu0 %v277
    %804 = vmatpush.msra.mxu0 %v275
    %805 = vmatpush.msra.mxu0 %v273
    %806 = vmatpush.msra.mxu0 %v271
    %807 = vmatpush.msra.mxu0 %v269
    %808 = vmatpush.msra.mxu0 %v267
    %809 = vmatmul.f32.gmra.mxu0 %v765
    %v810 = vpop.f32.mrf.mxu0
    %v811 = vadd.f32 0.0, %v810
    %812 = vdwg.mxu0
    %v813 = vadd.f32 %v770, %v791
    %v814 = vxor.u32 %v813, 2147483648
    %v815 = vmul.f32 %v814, 1.442695
    %v816 = vpow.pop %v815
    %v817 = vadd.f32 %v816, 1.0
    %v818 = vrcp.pop %v817
    %v819 = vmul.f32 %v817, %v818
    %v820 = vsub.f32 1.0, %v819
    %v821 = vmul.f32 %v818, %v820
    %v822 = vadd.f32 %v818, %v821
    %vm823 = vweird.f32 %v817
    %vm824 = vweird.f32 %v818
    %vm825 = vmor %vm823, %vm824
    %v826 = vsel %vm825, %v818, %v822
    %v827 = vand.u32 2147483647, %v817
    %vm828 = vcmp.eq.f32.partialorder %v827, 8.507059e+37
    %v829 = vand.u32 %v817, 2147483648
    %v830 = vor.u32 1.1754944e-38, %v829
    %v831 = vsel %vm828, %v830, %v826
    %v832 = vmul.f32 1.0, %v831
    %v833 = vadd.f32 %v771, %v811
    %v834 = vxor.u32 %v833, 2147483648
    %v835 = vmul.f32 %v834, 1.442695
    %v836 = vpow.pop %v835
    %v837 = vadd.f32 %v836, 1.0
    %v838 = vrcp.pop %v837
    %v839 = vmul.f32 %v837, %v838
    %v840 = vsub.f32 1.0, %v839
    %v841 = vmul.f32 %v838, %v840
    %v842 = vadd.f32 %v838, %v841
    %vm843 = vweird.f32 %v837
    %vm844 = vweird.f32 %v838
    %vm845 = vmor %vm843, %vm844
    %v846 = vsel %vm845, %v838, %v842
    %v847 = vand.u32 2147483647, %v837
    %vm848 = vcmp.eq.f32.partialorder %v847, 8.507059e+37
    %v849 = vand.u32 %v837, 2147483648
    %v850 = vor.u32 1.1754944e-38, %v849
    %v851 = vsel %vm848, %v850, %v846
    %v852 = vmul.f32 1.0, %v851
    %853 = vmatpush.msra.mxu0 %v393
    %854 = vmatpush.msra.mxu0 %v392
    %855 = vmatpush.msra.mxu0 %v391
    %856 = vmatpush.msra.mxu0 %v390
    %857 = vmatpush.msra.mxu0 %v389
    %858 = vmatpush.msra.mxu0 %v388
    %859 = vmatpush.msra.mxu0 %v387
    %860 = vmatpush.msra.mxu0 %v386
    %861 = vmatpush.msra.mxu0 %v385
    %862 = vmatpush.msra.mxu0 %v384
    %863 = vmatpush.msra.mxu0 %v383
    %864 = vmatpush.msra.mxu0 %v382
    %865 = vmatpush.msra.mxu0 %v381
    %866 = vmatpush.msra.mxu0 %v380
    %867 = vmatpush.msra.mxu0 %v379
    %868 = vmatpush.msra.mxu0 %v378
    %869 = vmatmul.f32.gmra.mxu0 %v765
    %v870 = vpop.f32.mrf.mxu0
    %v871 = vadd.f32 %v395, %v870
    %872 = vdwg.mxu0
    %v873 = vmul.f32 %v832, %v871
    %v874 = vadd.f32 %v772, %v873
    %v875 = vtanh.pop %v874
    %v876 = vsub.f32 1.0, %v852
    %v877 = vmul.f32 %v876, %v875
    %v878 = vmul.f32 %v852, %v765
    %v879 = vadd.f32 %v877, %v878
    %v880 = vmax.f32 %v766, %v879
    %s881 = smul.u32 5, 3
    %s882 = smul.addr %s881, 8
    %s883 = scalar_lea.vmem [#allocation2], %s882
    %v884 = vld [vmem:[%s883] sm:$0xff]
    %v885 = vld [vmem:[%s883 + $0x8] sm:$0xff]
    %v886 = vld [vmem:[%s883 + $0x10] sm:$0xff]
    %887 = vmatpush.msra.mxu0 %v296
    %888 = vmatpush.msra.mxu0 %v294
    %889 = vmatpush.msra.mxu0 %v292
    %890 = vmatpush.msra.mxu0 %v290
    %891 = vmatpush.msra.mxu0 %v288
    %892 = vmatpush.msra.mxu0 %v286
    %893 = vmatpush.msra.mxu0 %v284
    %894 = vmatpush.msra.mxu0 %v282
    %895 = vmatpush.msra.mxu0 %v280
    %896 = vmatpush.msra.mxu0 %v278
    %897 = vmatpush.msra.mxu0 %v276
    %898 = vmatpush.msra.mxu0 %v274
    %899 = vmatpush.msra.mxu0 %v272
    %900 = vmatpush.msra.mxu0 %v270
    %901 = vmatpush.msra.mxu0 %v268
    %902 = vmatpush.msra.mxu0 %v266
    %903 = vmatmul.f32.gmra.mxu0 %v879
    %v904 = vpop.f32.mrf.mxu0
    %v905 = vadd.f32 0.0, %v904
    %906 = vdwg.mxu0
    %907 = vmatpush.msra.mxu0 %v297
    %908 = vmatpush.msra.mxu0 %v295
    %909 = vmatpush.msra.mxu0 %v293
    %910 = vmatpush.msra.mxu0 %v291
    %911 = vmatpush.msra.mxu0 %v289
    %912 = vmatpush.msra.mxu0 %v287
    %913 = vmatpush.msra.mxu0 %v285
    %914 = vmatpush.msra.mxu0 %v283
    %915 = vmatpush.msra.mxu0 %v281
    %916 = vmatpush.msra.mxu0 %v279
    %917 = vmatpush.msra.mxu0 %v277
    %918 = vmatpush.msra.mxu0 %v275
    %919 = vmatpush.msra.mxu0 %v273
    %920 = vmatpush.msra.mxu0 %v271
    %921 = vmatpush.msra.mxu0 %v269
    %922 = vmatpush.msra.mxu0 %v267
    %923 = vmatmul.f32.gmra.mxu0 %v879
    %v924 = vpop.f32.mrf.mxu0
    %v925 = vadd.f32 0.0, %v924
    %926 = vdwg.mxu0
    %v927 = vadd.f32 %v884, %v905
    %v928 = vxor.u32 %v927, 2147483648
    %v929 = vmul.f32 %v928, 1.442695
    %v930 = vpow.pop %v929
    %v931 = vadd.f32 %v930, 1.0
    %v932 = vrcp.pop %v931
    %v933 = vmul.f32 %v931, %v932
    %v934 = vsub.f32 1.0, %v933
    %v935 = vmul.f32 %v932, %v934
    %v936 = vadd.f32 %v932, %v935
    %vm937 = vweird.f32 %v931
    %vm938 = vweird.f32 %v932
    %vm939 = vmor %vm937, %vm938
    %v940 = vsel %vm939, %v932, %v936
    %v941 = vand.u32 2147483647, %v931
    %vm942 = vcmp.eq.f32.partialorder %v941, 8.507059e+37
    %v943 = vand.u32 %v931, 2147483648
    %v944 = vor.u32 1.1754944e-38, %v943
    %v945 = vsel %vm942, %v944, %v940
    %v946 = vmul.f32 1.0, %v945
    %v947 = vadd.f32 %v885, %v925
    %v948 = vxor.u32 %v947, 2147483648
    %v949 = vmul.f32 %v948, 1.442695
    %v950 = vpow.pop %v949
    %v951 = vadd.f32 %v950, 1.0
    %v952 = vrcp.pop %v951
    %v953 = vmul.f32 %v951, %v952
    %v954 = vsub.f32 1.0, %v953
    %v955 = vmul.f32 %v952, %v954
    %v956 = vadd.f32 %v952, %v955
    %vm957 = vweird.f32 %v951
    %vm958 = vweird.f32 %v952
    %vm959 = vmor %vm957, %vm958
    %v960 = vsel %vm959, %v952, %v956
    %v961 = vand.u32 2147483647, %v951
    %vm962 = vcmp.eq.f32.partialorder %v961, 8.507059e+37
    %v963 = vand.u32 %v951, 2147483648
    %v964 = vor.u32 1.1754944e-38, %v963
    %v965 = vsel %vm962, %v964, %v960
    %v966 = vmul.f32 1.0, %v965
    %967 = vmatpush.msra.mxu0 %v393
    %968 = vmatpush.msra.mxu0 %v392
    %969 = vmatpush.msra.mxu0 %v391
    %970 = vmatpush.msra.mxu0 %v390
    %971 = vmatpush.msra.mxu0 %v389
    %972 = vmatpush.msra.mxu0 %v388
    %973 = vmatpush.msra.mxu0 %v387
    %974 = vmatpush.msra.mxu0 %v386
    %975 = vmatpush.msra.mxu0 %v385
    %976 = vmatpush.msra.mxu0 %v384
    %977 = vmatpush.msra.mxu0 %v383
    %978 = vmatpush.msra.mxu0 %v382
    %979 = vmatpush.msra.mxu0 %v381
    %980 = vmatpush.msra.mxu0 %v380
    %981 = vmatpush.msra.mxu0 %v379
    %982 = vmatpush.msra.mxu0 %v378
    %983 = vmatmul.f32.gmra.mxu0 %v879
    %v984 = vpop.f32.mrf.mxu0
    %v985 = vadd.f32 %v395, %v984
    %986 = vdwg.mxu0
    %v987 = vmul.f32 %v946, %v985
    %v988 = vadd.f32 %v886, %v987
    %v989 = vtanh.pop %v988
    %v990 = vsub.f32 1.0, %v966
    %v991 = vmul.f32 %v990, %v989
    %v992 = vmul.f32 %v966, %v879
    %v993 = vadd.f32 %v991, %v992
    %v994 = vmax.f32 %v880, %v993
    %s995 = smul.u32 6, 3
    %s996 = smul.addr %s995, 8
    %s997 = scalar_lea.vmem [#allocation2], %s996
    %v998 = vld [vmem:[%s997] sm:$0xff]
    %v999 = vld [vmem:[%s997 + $0x8] sm:$0xff]
    %v1000 = vld [vmem:[%s997 + $0x10] sm:$0xff]
    %1001 = vmatpush.msra.mxu0 %v296
    %1002 = vmatpush.msra.mxu0 %v294
    %1003 = vmatpush.msra.mxu0 %v292
    %1004 = vmatpush.msra.mxu0 %v290
    %1005 = vmatpush.msra.mxu0 %v288
    %1006 = vmatpush.msra.mxu0 %v286
    %1007 = vmatpush.msra.mxu0 %v284
    %1008 = vmatpush.msra.mxu0 %v282
    %1009 = vmatpush.msra.mxu0 %v280
    %1010 = vmatpush.msra.mxu0 %v278
    %1011 = vmatpush.msra.mxu0 %v276
    %1012 = vmatpush.msra.mxu0 %v274
    %1013 = vmatpush.msra.mxu0 %v272
    %1014 = vmatpush.msra.mxu0 %v270
    %1015 = vmatpush.msra.mxu0 %v268
    %1016 = vmatpush.msra.mxu0 %v266
    %1017 = vmatmul.f32.gmra.mxu0 %v993
    %v1018 = vpop.f32.mrf.mxu0
    %v1019 = vadd.f32 0.0, %v1018
    %1020 = vdwg.mxu0
    %1021 = vmatpush.msra.mxu0 %v297
    %1022 = vmatpush.msra.mxu0 %v295
    %1023 = vmatpush.msra.mxu0 %v293
    %1024 = vmatpush.msra.mxu0 %v291
    %1025 = vmatpush.msra.mxu0 %v289
    %1026 = vmatpush.msra.mxu0 %v287
    %1027 = vmatpush.msra.mxu0 %v285
    %1028 = vmatpush.msra.mxu0 %v283
    %1029 = vmatpush.msra.mxu0 %v281
    %1030 = vmatpush.msra.mxu0 %v279
    %1031 = vmatpush.msra.mxu0 %v277
    %1032 = vmatpush.msra.mxu0 %v275
    %1033 = vmatpush.msra.mxu0 %v273
    %1034 = vmatpush.msra.mxu0 %v271
    %1035 = vmatpush.msra.mxu0 %v269
    %1036 = vmatpush.msra.mxu0 %v267
    %1037 = vmatmul.f32.gmra.mxu0 %v993
    %v1038 = vpop.f32.mrf.mxu0
    %v1039 = vadd.f32 0.0, %v1038
    %1040 = vdwg.mxu0
    %v1041 = vadd.f32 %v998, %v1019
    %v1042 = vxor.u32 %v1041, 2147483648
    %v1043 = vmul.f32 %v1042, 1.442695
    %v1044 = vpow.pop %v1043
    %v1045 = vadd.f32 %v1044, 1.0
    %v1046 = vrcp.pop %v1045
    %v1047 = vmul.f32 %v1045, %v1046
    %v1048 = vsub.f32 1.0, %v1047
    %v1049 = vmul.f32 %v1046, %v1048
    %v1050 = vadd.f32 %v1046, %v1049
    %vm1051 = vweird.f32 %v1045
    %vm1052 = vweird.f32 %v1046
    %vm1053 = vmor %vm1051, %vm1052
    %v1054 = vsel %vm1053, %v1046, %v1050
    %v1055 = vand.u32 2147483647, %v1045
    %vm1056 = vcmp.eq.f32.partialorder %v1055, 8.507059e+37
    %v1057 = vand.u32 %v1045, 2147483648
    %v1058 = vor.u32 1.1754944e-38, %v1057
    %v1059 = vsel %vm1056, %v1058, %v1054
    %v1060 = vmul.f32 1.0, %v1059
    %v1061 = vadd.f32 %v999, %v1039
    %v1062 = vxor.u32 %v1061, 2147483648
    %v1063 = vmul.f32 %v1062, 1.442695
    %v1064 = vpow.pop %v1063
    %v1065 = vadd.f32 %v1064, 1.0
    %v1066 = vrcp.pop %v1065
    %v1067 = vmul.f32 %v1065, %v1066
    %v1068 = vsub.f32 1.0, %v1067
    %v1069 = vmul.f32 %v1066, %v1068
    %v1070 = vadd.f32 %v1066, %v1069
    %vm1071 = vweird.f32 %v1065
    %vm1072 = vweird.f32 %v1066
    %vm1073 = vmor %vm1071, %vm1072
    %v1074 = vsel %vm1073, %v1066, %v1070
    %v1075 = vand.u32 2147483647, %v1065
    %vm1076 = vcmp.eq.f32.partialorder %v1075, 8.507059e+37
    %v1077 = vand.u32 %v1065, 2147483648
    %v1078 = vor.u32 1.1754944e-38, %v1077
    %v1079 = vsel %vm1076, %v1078, %v1074
    %v1080 = vmul.f32 1.0, %v1079
    %1081 = vmatpush.msra.mxu0 %v393
    %1082 = vmatpush.msra.mxu0 %v392
    %1083 = vmatpush.msra.mxu0 %v391
    %1084 = vmatpush.msra.mxu0 %v390
    %1085 = vmatpush.msra.mxu0 %v389
    %1086 = vmatpush.msra.mxu0 %v388
    %1087 = vmatpush.msra.mxu0 %v387
    %1088 = vmatpush.msra.mxu0 %v386
    %1089 = vmatpush.msra.mxu0 %v385
    %1090 = vmatpush.msra.mxu0 %v384
    %1091 = vmatpush.msra.mxu0 %v383
    %1092 = vmatpush.msra.mxu0 %v382
    %1093 = vmatpush.msra.mxu0 %v381
    %1094 = vmatpush.msra.mxu0 %v380
    %1095 = vmatpush.msra.mxu0 %v379
    %1096 = vmatpush.msra.mxu0 %v378
    %1097 = vmatmul.f32.gmra.mxu0 %v993
    %v1098 = vpop.f32.mrf.mxu0
    %v1099 = vadd.f32 %v395, %v1098
    %1100 = vdwg.mxu0
    %v1101 = vmul.f32 %v1060, %v1099
    %v1102 = vadd.f32 %v1000, %v1101
    %v1103 = vtanh.pop %v1102
    %v1104 = vsub.f32 1.0, %v1080
    %v1105 = vmul.f32 %v1104, %v1103
    %v1106 = vmul.f32 %v1080, %v993
    %v1107 = vadd.f32 %v1105, %v1106
    %v1108 = vmax.f32 %v994, %v1107
    %s1109 = smul.u32 7, 3
    %s1110 = smul.addr %s1109, 8
    %s1111 = scalar_lea.vmem [#allocation2], %s1110
    %v1112 = vld [vmem:[%s1111] sm:$0xff]
    %v1113 = vld [vmem:[%s1111 + $0x8] sm:$0xff]
    %v1114 = vld [vmem:[%s1111 + $0x10] sm:$0xff]
    %1115 = vmatpush.msra.mxu0 %v296
    %1116 = vmatpush.msra.mxu0 %v294
    %1117 = vmatpush.msra.mxu0 %v292
    %1118 = vmatpush.msra.mxu0 %v290
    %1119 = vmatpush.msra.mxu0 %v288
    %1120 = vmatpush.msra.mxu0 %v286
    %1121 = vmatpush.msra.mxu0 %v284
    %1122 = vmatpush.msra.mxu0 %v282
    %1123 = vmatpush.msra.mxu0 %v280
    %1124 = vmatpush.msra.mxu0 %v278
    %1125 = vmatpush.msra.mxu0 %v276
    %1126 = vmatpush.msra.mxu0 %v274
    %1127 = vmatpush.msra.mxu0 %v272
    %1128 = vmatpush.msra.mxu0 %v270
    %1129 = vmatpush.msra.mxu0 %v268
    %1130 = vmatpush.msra.mxu0 %v266
    %1131 = vmatmul.f32.gmra.mxu0 %v1107
    %v1132 = vpop.f32.mrf.mxu0
    %v1133 = vadd.f32 0.0, %v1132
    %1134 = vdwg.mxu0
    %1135 = vmatpush.msra.mxu0 %v297
    %1136 = vmatpush.msra.mxu0 %v295
    %1137 = vmatpush.msra.mxu0 %v293
    %1138 = vmatpush.msra.mxu0 %v291
    %1139 = vmatpush.msra.mxu0 %v289
    %1140 = vmatpush.msra.mxu0 %v287
    %1141 = vmatpush.msra.mxu0 %v285
    %1142 = vmatpush.msra.mxu0 %v283
    %1143 = vmatpush.msra.mxu0 %v281
    %1144 = vmatpush.msra.mxu0 %v279
    %1145 = vmatpush.msra.mxu0 %v277
    %1146 = vmatpush.msra.mxu0 %v275
    %1147 = vmatpush.msra.mxu0 %v273
    %1148 = vmatpush.msra.mxu0 %v271
    %1149 = vmatpush.msra.mxu0 %v269
    %1150 = vmatpush.msra.mxu0 %v267
    %1151 = vmatmul.f32.gmra.mxu0 %v1107
    %v1152 = vpop.f32.mrf.mxu0
    %v1153 = vadd.f32 0.0, %v1152
    %1154 = vdwg.mxu0
    %v1155 = vadd.f32 %v1112, %v1133
    %v1156 = vxor.u32 %v1155, 2147483648
    %v1157 = vmul.f32 %v1156, 1.442695
    %v1158 = vpow.pop %v1157
    %v1159 = vadd.f32 %v1158, 1.0
    %v1160 = vrcp.pop %v1159
    %v1161 = vmul.f32 %v1159, %v1160
    %v1162 = vsub.f32 1.0, %v1161
    %v1163 = vmul.f32 %v1160, %v1162
    %v1164 = vadd.f32 %v1160, %v1163
    %vm1165 = vweird.f32 %v1159
    %vm1166 = vweird.f32 %v1160
    %vm1167 = vmor %vm1165, %vm1166
    %v1168 = vsel %vm1167, %v1160, %v1164
    %v1169 = vand.u32 2147483647, %v1159
    %vm1170 = vcmp.eq.f32.partialorder %v1169, 8.507059e+37
    %v1171 = vand.u32 %v1159, 2147483648
    %v1172 = vor.u32 1.1754944e-38, %v1171
    %v1173 = vsel %vm1170, %v1172, %v1168
    %v1174 = vmul.f32 1.0, %v1173
    %v1175 = vadd.f32 %v1113, %v1153
    %v1176 = vxor.u32 %v1175, 2147483648
    %v1177 = vmul.f32 %v1176, 1.442695
    %v1178 = vpow.pop %v1177
    %v1179 = vadd.f32 %v1178, 1.0
    %v1180 = vrcp.pop %v1179
    %v1181 = vmul.f32 %v1179, %v1180
    %v1182 = vsub.f32 1.0, %v1181
    %v1183 = vmul.f32 %v1180, %v1182
    %v1184 = vadd.f32 %v1180, %v1183
    %vm1185 = vweird.f32 %v1179
    %vm1186 = vweird.f32 %v1180
    %vm1187 = vmor %vm1185, %vm1186
    %v1188 = vsel %vm1187, %v1180, %v1184
    %v1189 = vand.u32 2147483647, %v1179
    %vm1190 = vcmp.eq.f32.partialorder %v1189, 8.507059e+37
    %v1191 = vand.u32 %v1179, 2147483648
    %v1192 = vor.u32 1.1754944e-38, %v1191
    %v1193 = vsel %vm1190, %v1192, %v1188
    %v1194 = vmul.f32 1.0, %v1193
    %1195 = vmatpush.msra.mxu0 %v393
    %1196 = vmatpush.msra.mxu0 %v392
    %1197 = vmatpush.msra.mxu0 %v391
    %1198 = vmatpush.msra.mxu0 %v390
    %1199 = vmatpush.msra.mxu0 %v389
    %1200 = vmatpush.msra.mxu0 %v388
    %1201 = vmatpush.msra.mxu0 %v387
    %1202 = vmatpush.msra.mxu0 %v386
    %1203 = vmatpush.msra.mxu0 %v385
    %1204 = vmatpush.msra.mxu0 %v384
    %1205 = vmatpush.msra.mxu0 %v383
    %1206 = vmatpush.msra.mxu0 %v382
    %1207 = vmatpush.msra.mxu0 %v381
    %1208 = vmatpush.msra.mxu0 %v380
    %1209 = vmatpush.msra.mxu0 %v379
    %1210 = vmatpush.msra.mxu0 %v378
    %1211 = vmatmul.f32.gmra.mxu0 %v1107
    %v1212 = vpop.f32.mrf.mxu0
    %v1213 = vadd.f32 %v395, %v1212
    %1214 = vdwg.mxu0
    %v1215 = vmul.f32 %v1174, %v1213
    %v1216 = vadd.f32 %v1114, %v1215
    %v1217 = vtanh.pop %v1216
    %v1218 = vsub.f32 1.0, %v1194
    %v1219 = vmul.f32 %v1218, %v1217
    %v1220 = vmul.f32 %v1194, %v1107
    %v1221 = vadd.f32 %v1219, %v1220
    %v1222 = vmax.f32 %v1108, %v1221
    %1223 = vst [vmem:[#allocation3] sm:$0xff] %v1221
    %1224 = vst [vmem:[#allocation4] sm:$0xff] %v1222
    // Predicated region
    $region34: #{tpu_custom_call.1} parent=1 // pred_check
      %p1225 = pneg %p51
    $region35: #{tpu_custom_call.1} parent=1 // pred_check_branch
      %1227 = sbr.rel (%p1225) target = $region37
    $region36: #{tpu_custom_call.1} parent=1 // pred_region
      %v1228 = vld [vmem:[#allocation3] sm:$0xff]
      %v1229 = vld [vmem:[#allocation4] sm:$0xff]
      %v1230 = vadd.f32 %v1228, %v1229
      %1231 = vst [vmem:[#allocation10] sm:$0xff] %v1230
    $region37: #{tpu_custom_call.1} parent=1 // pred_fallthru
      _
    // Predicated region
    $region38: #{tpu_custom_call.1} parent=1 // pred_check
      _
    $region39: #{tpu_custom_call.1} parent=1 // pred_check_branch
      %1233 = sbr.rel (0) target = $region41
    $region40: #{tpu_custom_call.1} parent=1 // pred_region
      %1235 = vsyncadd [#allocation7], 0
      %s1237 = sshll.u32 [#allocation10], 4
      %s1238 = int_to_ptr.vmem [resolvable:$true] %s1237
      %s1239 = sshll.u32 %s5, 4
      %s1240 = int_to_ptr.hbm [resolvable:$true] %s1239
      %1242 = dma.vmem_to_hbm [thread:$0]  %s1238, 128, %s1240, [#allocation7]
    $region41: #{tpu_custom_call.1} parent=1 // pred_fallthru
      _
    // Predicated region
    $region42: #{tpu_custom_call.1} parent=1 // pred_check
      _
    $region43: #{tpu_custom_call.1} parent=1 // pred_check_branch
      %1244 = sbr.rel (0) target = $region45
    $region44: #{tpu_custom_call.1} parent=1 // pred_region
      %1246 = dma.done [#allocation7], 128
    $region45: #{tpu_custom_call.1} parent=1 // pred_fallthru
      _
    %1247 = vsyncpa [#allocation6], 1
    %1248 = vsyncpa [#allocation9], 1
    %1249 = vsyncpa [#allocation7], 1

</llo_original>
